<compile_context>
chip_gen: v5e
topology: v5e:2x2
jax: 0.10.0
libtpu: 0.0.40
codegen_flags: <defaults>
</compile_context>

<pallas_src>
import functools

import jax
import jax.numpy as jnp
from jax.experimental import pallas as pl
from jax.experimental.pallas import tpu as pltpu

S_IN = 13
S_IN_PAD = 16           # pad input features to a sublane-aligned 16
S_OUT = 1
LAYER_NUM = 32          # -> 30 hidden (layer_size x layer_size) layers
LAYER_SIZE = 16
N_HIDDEN = LAYER_NUM - 2


def _round_up(x, m):
    return ((x + m - 1) // m) * m


def _mlp_kernel(x_ref, w_in_ref, b_in_ref, w_hid_ref, b_hid_ref,
                w_out_ref, b_out_ref, o_ref):
    # x_ref:     (S_IN_PAD, TB)            transposed input, batch on lanes
    # w_in_ref:  (LAYER_SIZE, S_IN_PAD)    W_in^T (zero-padded cols 13..15)
    # b_in_ref:  (LAYER_SIZE, 1)
    # w_hid_ref: (LAYER_SIZE, N_HIDDEN*LAYER_SIZE)  [:, i*16:(i+1)*16] = W_i^T
    # b_hid_ref: (LAYER_SIZE, N_HIDDEN)
    # w_out_ref: (1, LAYER_SIZE)           W_out^T
    # b_out_ref: (1, 1)
    # o_ref:     (1, TB)
    x = x_ref[...]

    h = jnp.dot(w_in_ref[...], x, preferred_element_type=jnp.float32)
    h = jnp.maximum(h + b_in_ref[...], 0.0)                      # (16, TB)

    # Fully unrolled hidden stack: static, zero-cost slices of the packed
    # weight/bias stacks; 30 tiny serially-dependent matmuls interleave freely.
    for i in range(N_HIDDEN):
        w = w_hid_ref[:, i * LAYER_SIZE:(i + 1) * LAYER_SIZE]    # (16, 16) = W_i^T
        b = b_hid_ref[:, i:i + 1]                                # (16, 1)
        h = jnp.dot(w, h, preferred_element_type=jnp.float32) + b
        h = jnp.maximum(h, 0.0)

    y = jnp.dot(w_out_ref[...], h, preferred_element_type=jnp.float32)
    o_ref[...] = (y + b_out_ref[...]).astype(o_ref.dtype)        # (1, TB)


@functools.partial(jax.jit, static_argnames=("tile_b",))
def mlp_forward(x, params, tile_b=512):
    B, F = x.shape
    assert F == S_IN
    w_in_t, b_in, w_hid_t, b_hid, w_out_t, b_out = params

    # Lane-aligned batch tile: multiple of 128, at most tile_b.
    tb = min(tile_b, _round_up(B, 128))
    padded_B = _round_up(B, tb)

    # Transpose (batch -> lanes) and zero-pad both the feature dim (13 -> 16)
    # and the batch dim (B -> padded_B).  Zero rows/cols are inert in the math.
    x_t = x.astype(jnp.float32).T                                 # (S_IN, B)
    x_t = jnp.pad(x_t, ((0, S_IN_PAD - S_IN), (0, padded_B - B)))

    # Zero-pad W_in^T columns 13..15 to match the padded contraction dim.
    w_in_t_p = jnp.pad(w_in_t.astype(jnp.float32),
                       ((0, 0), (0, S_IN_PAD - S_IN)))            # (16, 16)

    grid = (padded_B // tb,)

    flops = 2 * padded_B * (S_IN_PAD * LAYER_SIZE
                            + N_HIDDEN * LAYER_SIZE * LAYER_SIZE
                            + LAYER_SIZE)
    param_bytes = sum(int(p.size) * 4 for p in params)
    bytes_accessed = padded_B * S_IN_PAD * 4 + padded_B * 4 + param_bytes

    out = pl.pallas_call(
        _mlp_kernel,
        out_shape=jax.ShapeDtypeStruct((1, padded_B), jnp.float32),
        grid_spec=pltpu.PrefetchScalarGridSpec(
            num_scalar_prefetch=0,
            grid=grid,
            in_specs=[
                pl.BlockSpec((S_IN_PAD, tb), lambda i: (0, i)),
                pl.BlockSpec((LAYER_SIZE, S_IN_PAD), lambda i: (0, 0)),
                pl.BlockSpec((LAYER_SIZE, 1), lambda i: (0, 0)),
                pl.BlockSpec((LAYER_SIZE, N_HIDDEN * LAYER_SIZE),
                             lambda i: (0, 0)),
                pl.BlockSpec((LAYER_SIZE, N_HIDDEN), lambda i: (0, 0)),
                pl.BlockSpec((1, LAYER_SIZE), lambda i: (0, 0)),
                pl.BlockSpec((1, 1), lambda i: (0, 0)),
            ],
            out_specs=pl.BlockSpec((1, tb), lambda i: (0, i)),
        ),
        compiler_params=pltpu.CompilerParams(
            dimension_semantics=("parallel",)),
        cost_estimate=pl.CostEstimate(
            flops=flops, transcendentals=0, bytes_accessed=bytes_accessed),
    )(x_t, w_in_t_p, b_in, w_hid_t, b_hid, w_out_t, b_out)

    # y.squeeze() in the reference: (B, 1) -> (B,)
    return out[0, :B]


def init_params(key):
    """Deterministic init mimicking torch.nn.Linear (U(-1/sqrt(fan_in), +)),
    stored directly in the transposed / lane-packed kernel layout."""
    ks = jax.random.split(key, 6)

    def uni(k, shape, fan_in):
        bound = 1.0 / jnp.sqrt(fan_in)
        return jax.random.uniform(k, shape, jnp.float32, -bound, bound)

    w_in_t = uni(ks[0], (LAYER_SIZE, S_IN), S_IN)                 # W_in^T
    b_in = uni(ks[1], (LAYER_SIZE, 1), S_IN)
    w_hid_t = uni(ks[2], (LAYER_SIZE, N_HIDDEN * LAYER_SIZE), LAYER_SIZE)
    b_hid = uni(ks[3], (LAYER_SIZE, N_HIDDEN), LAYER_SIZE)
    w_out_t = uni(ks[4], (1, LAYER_SIZE), LAYER_SIZE)             # W_out^T
    b_out = uni(ks[5], (1, 1), LAYER_SIZE)
    return (w_in_t, b_in, w_hid_t, b_hid, w_out_t, b_out)


def mlp_reference(x, params):
    w_in_t, b_in, w_hid_t, b_hid, w_out_t, b_out = params
    h = jnp.maximum(x @ w_in_t.T + b_in[:, 0], 0.0)
    for i in range(N_HIDDEN):
        w_t = w_hid_t[:, i * LAYER_SIZE:(i + 1) * LAYER_SIZE]     # W_i^T
        h = jnp.maximum(h @ w_t.T + b_hid[:, i], 0.0)
    y = h @ w_out_t.T + b_out[0, 0]
    return jnp.squeeze(y, axis=-1)


if __name__ == "__main__":
    key = jax.random.PRNGKey(0)
    kx, kp = jax.random.split(key)
    B = 8
    x = jax.random.normal(kx, (B, S_IN), dtype=jnp.float32)
    params = init_params(kp)

    y = mlp_forward(x, params)
    y = jax.block_until_ready(y)

    y_ref = mlp_reference(x, params)
    assert y.shape == (B,)
    assert jnp.allclose(y, y_ref, atol=1e-4, rtol=1e-4), (y, y_ref)
    print("KERNEL_OK")
</pallas_src>

<mosaic_0001>
module attributes {stable_mosaic.version = 11 : i64} {
  func.func @_mlp_kernel(%arg0: i32, %arg1: memref<16x128xf32, #tpu.memory_space<vmem>>, %arg2: memref<16x16xf32, #tpu.memory_space<vmem>>, %arg3: memref<16x1xf32, #tpu.memory_space<vmem>>, %arg4: memref<16x480xf32, #tpu.memory_space<vmem>>, %arg5: memref<16x30xf32, #tpu.memory_space<vmem>>, %arg6: memref<1x16xf32, #tpu.memory_space<vmem>>, %arg7: memref<1x1xf32, #tpu.memory_space<vmem>>, %arg8: memref<1x128xf32, #tpu.memory_space<vmem>>) attributes {dimension_semantics = [#tpu.dimension_semantics<parallel>], iteration_bounds = array<i64: 1>, scalar_prefetch = 0 : i64, scratch_operands = 0 : i64, tpu.core_type = #tpu.core_type<tc>, window_params = [{transform_indices = @transform_0, window_bounds = array<i64: 16, 128>}, {pipeline_mode = #tpu.pipeline_mode<synchronous>, transform_indices = @transform_1, window_bounds = array<i64: 16, 16>}, {pipeline_mode = #tpu.pipeline_mode<synchronous>, transform_indices = @transform_2, window_bounds = array<i64: 16, 1>}, {pipeline_mode = #tpu.pipeline_mode<synchronous>, transform_indices = @transform_3, window_bounds = array<i64: 16, 480>}, {pipeline_mode = #tpu.pipeline_mode<synchronous>, transform_indices = @transform_4, window_bounds = array<i64: 16, 30>}, {pipeline_mode = #tpu.pipeline_mode<synchronous>, transform_indices = @transform_5, window_bounds = array<i64: 1, 16>}, {pipeline_mode = #tpu.pipeline_mode<synchronous>, transform_indices = @transform_6, window_bounds = array<i64: 1, 1>}, {transform_indices = @transform_7, window_bounds = array<i64: 1, 128>}]} {
    %c0 = arith.constant 0 : index
    %c0_0 = arith.constant 0 : index
    %0 = vector.load %arg1[%c0, %c0_0] : memref<16x128xf32, #tpu.memory_space<vmem>>, vector<16x128xf32>
    %c0_1 = arith.constant 0 : index
    %c0_2 = arith.constant 0 : index
    %1 = vector.load %arg2[%c0_1, %c0_2] : memref<16x16xf32, #tpu.memory_space<vmem>>, vector<16x16xf32>
    %cst = arith.constant dense<0.000000e+00> : vector<16x128xf32>
    %2 = tpu.matmul %1, %0, %cst {dimension_numbers = #tpu.dot_dimension_numbers<[1], [0], [0], [1], [0, 0, 1, 1], [], []>} : vector<16x16xf32>, vector<16x128xf32>, vector<16x128xf32> -> vector<16x128xf32>
    %c0_3 = arith.constant 0 : index
    %c0_4 = arith.constant 0 : index
    %3 = vector.load %arg3[%c0_3, %c0_4] : memref<16x1xf32, #tpu.memory_space<vmem>>, vector<16x1xf32>
    %4 = vector.broadcast %3 : vector<16x1xf32> to vector<16x128xf32>
    %5 = arith.addf %2, %4 : vector<16x128xf32>
    %cst_5 = arith.constant 0.000000e+00 : f32
    %6 = vector.broadcast %cst_5 : f32 to vector<16x128xf32>
    %7 = arith.maximumf %5, %6 : vector<16x128xf32>
    %c0_6 = arith.constant 0 : index
    %c0_7 = arith.constant 0 : index
    %8 = vector.load %arg4[%c0_6, %c0_7] : memref<16x480xf32, #tpu.memory_space<vmem>>, vector<16x16xf32>
    %c0_8 = arith.constant 0 : index
    %c0_9 = arith.constant 0 : index
    %9 = vector.load %arg5[%c0_8, %c0_9] : memref<16x30xf32, #tpu.memory_space<vmem>>, vector<16x1xf32>
    %cst_10 = arith.constant dense<0.000000e+00> : vector<16x128xf32>
    %10 = tpu.matmul %8, %7, %cst_10 {dimension_numbers = #tpu.dot_dimension_numbers<[1], [0], [0], [1], [0, 0, 1, 1], [], []>} : vector<16x16xf32>, vector<16x128xf32>, vector<16x128xf32> -> vector<16x128xf32>
    %11 = vector.broadcast %9 : vector<16x1xf32> to vector<16x128xf32>
    %12 = arith.addf %10, %11 : vector<16x128xf32>
    %cst_11 = arith.constant 0.000000e+00 : f32
    %13 = vector.broadcast %cst_11 : f32 to vector<16x128xf32>
    %14 = arith.maximumf %12, %13 : vector<16x128xf32>
    %c0_12 = arith.constant 0 : index
    %c16 = arith.constant 16 : index
    %15 = vector.load %arg4[%c0_12, %c16] : memref<16x480xf32, #tpu.memory_space<vmem>>, vector<16x16xf32>
    %c0_13 = arith.constant 0 : index
    %c1 = arith.constant 1 : index
    %16 = vector.load %arg5[%c0_13, %c1] : memref<16x30xf32, #tpu.memory_space<vmem>>, vector<16x1xf32>
    %cst_14 = arith.constant dense<0.000000e+00> : vector<16x128xf32>
    %17 = tpu.matmul %15, %14, %cst_14 {dimension_numbers = #tpu.dot_dimension_numbers<[1], [0], [0], [1], [0, 0, 1, 1], [], []>} : vector<16x16xf32>, vector<16x128xf32>, vector<16x128xf32> -> vector<16x128xf32>
    %18 = vector.broadcast %16 : vector<16x1xf32> to vector<16x128xf32>
    %19 = arith.addf %17, %18 : vector<16x128xf32>
    %cst_15 = arith.constant 0.000000e+00 : f32
    %20 = vector.broadcast %cst_15 : f32 to vector<16x128xf32>
    %21 = arith.maximumf %19, %20 : vector<16x128xf32>
    %c0_16 = arith.constant 0 : index
    %c32 = arith.constant 32 : index
    %22 = vector.load %arg4[%c0_16, %c32] : memref<16x480xf32, #tpu.memory_space<vmem>>, vector<16x16xf32>
    %c0_17 = arith.constant 0 : index
    %c2 = arith.constant 2 : index
    %23 = vector.load %arg5[%c0_17, %c2] : memref<16x30xf32, #tpu.memory_space<vmem>>, vector<16x1xf32>
    %cst_18 = arith.constant dense<0.000000e+00> : vector<16x128xf32>
    %24 = tpu.matmul %22, %21, %cst_18 {dimension_numbers = #tpu.dot_dimension_numbers<[1], [0], [0], [1], [0, 0, 1, 1], [], []>} : vector<16x16xf32>, vector<16x128xf32>, vector<16x128xf32> -> vector<16x128xf32>
    %25 = vector.broadcast %23 : vector<16x1xf32> to vector<16x128xf32>
    %26 = arith.addf %24, %25 : vector<16x128xf32>
    %cst_19 = arith.constant 0.000000e+00 : f32
    %27 = vector.broadcast %cst_19 : f32 to vector<16x128xf32>
    %28 = arith.maximumf %26, %27 : vector<16x128xf32>
    %c0_20 = arith.constant 0 : index
    %c48 = arith.constant 48 : index
    %29 = vector.load %arg4[%c0_20, %c48] : memref<16x480xf32, #tpu.memory_space<vmem>>, vector<16x16xf32>
    %c0_21 = arith.constant 0 : index
    %c3 = arith.constant 3 : index
    %30 = vector.load %arg5[%c0_21, %c3] : memref<16x30xf32, #tpu.memory_space<vmem>>, vector<16x1xf32>
    %cst_22 = arith.constant dense<0.000000e+00> : vector<16x128xf32>
    %31 = tpu.matmul %29, %28, %cst_22 {dimension_numbers = #tpu.dot_dimension_numbers<[1], [0], [0], [1], [0, 0, 1, 1], [], []>} : vector<16x16xf32>, vector<16x128xf32>, vector<16x128xf32> -> vector<16x128xf32>
    %32 = vector.broadcast %30 : vector<16x1xf32> to vector<16x128xf32>
    %33 = arith.addf %31, %32 : vector<16x128xf32>
    %cst_23 = arith.constant 0.000000e+00 : f32
    %34 = vector.broadcast %cst_23 : f32 to vector<16x128xf32>
    %35 = arith.maximumf %33, %34 : vector<16x128xf32>
    %c0_24 = arith.constant 0 : index
    %c64 = arith.constant 64 : index
    %36 = vector.load %arg4[%c0_24, %c64] : memref<16x480xf32, #tpu.memory_space<vmem>>, vector<16x16xf32>
    %c0_25 = arith.constant 0 : index
    %c4 = arith.constant 4 : index
    %37 = vector.load %arg5[%c0_25, %c4] : memref<16x30xf32, #tpu.memory_space<vmem>>, vector<16x1xf32>
    %cst_26 = arith.constant dense<0.000000e+00> : vector<16x128xf32>
    %38 = tpu.matmul %36, %35, %cst_26 {dimension_numbers = #tpu.dot_dimension_numbers<[1], [0], [0], [1], [0, 0, 1, 1], [], []>} : vector<16x16xf32>, vector<16x128xf32>, vector<16x128xf32> -> vector<16x128xf32>
    %39 = vector.broadcast %37 : vector<16x1xf32> to vector<16x128xf32>
    %40 = arith.addf %38, %39 : vector<16x128xf32>
    %cst_27 = arith.constant 0.000000e+00 : f32
    %41 = vector.broadcast %cst_27 : f32 to vector<16x128xf32>
    %42 = arith.maximumf %40, %41 : vector<16x128xf32>
    %c0_28 = arith.constant 0 : index
    %c80 = arith.constant 80 : index
    %43 = vector.load %arg4[%c0_28, %c80] : memref<16x480xf32, #tpu.memory_space<vmem>>, vector<16x16xf32>
    %c0_29 = arith.constant 0 : index
    %c5 = arith.constant 5 : index
    %44 = vector.load %arg5[%c0_29, %c5] : memref<16x30xf32, #tpu.memory_space<vmem>>, vector<16x1xf32>
    %cst_30 = arith.constant dense<0.000000e+00> : vector<16x128xf32>
    %45 = tpu.matmul %43, %42, %cst_30 {dimension_numbers = #tpu.dot_dimension_numbers<[1], [0], [0], [1], [0, 0, 1, 1], [], []>} : vector<16x16xf32>, vector<16x128xf32>, vector<16x128xf32> -> vector<16x128xf32>
    %46 = vector.broadcast %44 : vector<16x1xf32> to vector<16x128xf32>
    %47 = arith.addf %45, %46 : vector<16x128xf32>
    %cst_31 = arith.constant 0.000000e+00 : f32
    %48 = vector.broadcast %cst_31 : f32 to vector<16x128xf32>
    %49 = arith.maximumf %47, %48 : vector<16x128xf32>
    %c0_32 = arith.constant 0 : index
    %c96 = arith.constant 96 : index
    %50 = vector.load %arg4[%c0_32, %c96] : memref<16x480xf32, #tpu.memory_space<vmem>>, vector<16x16xf32>
    %c0_33 = arith.constant 0 : index
    %c6 = arith.constant 6 : index
    %51 = vector.load %arg5[%c0_33, %c6] : memref<16x30xf32, #tpu.memory_space<vmem>>, vector<16x1xf32>
    %cst_34 = arith.constant dense<0.000000e+00> : vector<16x128xf32>
    %52 = tpu.matmul %50, %49, %cst_34 {dimension_numbers = #tpu.dot_dimension_numbers<[1], [0], [0], [1], [0, 0, 1, 1], [], []>} : vector<16x16xf32>, vector<16x128xf32>, vector<16x128xf32> -> vector<16x128xf32>
    %53 = vector.broadcast %51 : vector<16x1xf32> to vector<16x128xf32>
    %54 = arith.addf %52, %53 : vector<16x128xf32>
    %cst_35 = arith.constant 0.000000e+00 : f32
    %55 = vector.broadcast %cst_35 : f32 to vector<16x128xf32>
    %56 = arith.maximumf %54, %55 : vector<16x128xf32>
    %c0_36 = arith.constant 0 : index
    %c112 = arith.constant 112 : index
    %57 = vector.load %arg4[%c0_36, %c112] : memref<16x480xf32, #tpu.memory_space<vmem>>, vector<16x16xf32>
    %c0_37 = arith.constant 0 : index
    %c7 = arith.constant 7 : index
    %58 = vector.load %arg5[%c0_37, %c7] : memref<16x30xf32, #tpu.memory_space<vmem>>, vector<16x1xf32>
    %cst_38 = arith.constant dense<0.000000e+00> : vector<16x128xf32>
    %59 = tpu.matmul %57, %56, %cst_38 {dimension_numbers = #tpu.dot_dimension_numbers<[1], [0], [0], [1], [0, 0, 1, 1], [], []>} : vector<16x16xf32>, vector<16x128xf32>, vector<16x128xf32> -> vector<16x128xf32>
    %60 = vector.broadcast %58 : vector<16x1xf32> to vector<16x128xf32>
    %61 = arith.addf %59, %60 : vector<16x128xf32>
    %cst_39 = arith.constant 0.000000e+00 : f32
    %62 = vector.broadcast %cst_39 : f32 to vector<16x128xf32>
    %63 = arith.maximumf %61, %62 : vector<16x128xf32>
    %c0_40 = arith.constant 0 : index
    %c128 = arith.constant 128 : index
    %64 = vector.load %arg4[%c0_40, %c128] : memref<16x480xf32, #tpu.memory_space<vmem>>, vector<16x16xf32>
    %c0_41 = arith.constant 0 : index
    %c8 = arith.constant 8 : index
    %65 = vector.load %arg5[%c0_41, %c8] : memref<16x30xf32, #tpu.memory_space<vmem>>, vector<16x1xf32>
    %cst_42 = arith.constant dense<0.000000e+00> : vector<16x128xf32>
    %66 = tpu.matmul %64, %63, %cst_42 {dimension_numbers = #tpu.dot_dimension_numbers<[1], [0], [0], [1], [0, 0, 1, 1], [], []>} : vector<16x16xf32>, vector<16x128xf32>, vector<16x128xf32> -> vector<16x128xf32>
    %67 = vector.broadcast %65 : vector<16x1xf32> to vector<16x128xf32>
    %68 = arith.addf %66, %67 : vector<16x128xf32>
    %cst_43 = arith.constant 0.000000e+00 : f32
    %69 = vector.broadcast %cst_43 : f32 to vector<16x128xf32>
    %70 = arith.maximumf %68, %69 : vector<16x128xf32>
    %c0_44 = arith.constant 0 : index
    %c144 = arith.constant 144 : index
    %71 = vector.load %arg4[%c0_44, %c144] : memref<16x480xf32, #tpu.memory_space<vmem>>, vector<16x16xf32>
    %c0_45 = arith.constant 0 : index
    %c9 = arith.constant 9 : index
    %72 = vector.load %arg5[%c0_45, %c9] : memref<16x30xf32, #tpu.memory_space<vmem>>, vector<16x1xf32>
    %cst_46 = arith.constant dense<0.000000e+00> : vector<16x128xf32>
    %73 = tpu.matmul %71, %70, %cst_46 {dimension_numbers = #tpu.dot_dimension_numbers<[1], [0], [0], [1], [0, 0, 1, 1], [], []>} : vector<16x16xf32>, vector<16x128xf32>, vector<16x128xf32> -> vector<16x128xf32>
    %74 = vector.broadcast %72 : vector<16x1xf32> to vector<16x128xf32>
    %75 = arith.addf %73, %74 : vector<16x128xf32>
    %cst_47 = arith.constant 0.000000e+00 : f32
    %76 = vector.broadcast %cst_47 : f32 to vector<16x128xf32>
    %77 = arith.maximumf %75, %76 : vector<16x128xf32>
    %c0_48 = arith.constant 0 : index
    %c160 = arith.constant 160 : index
    %78 = vector.load %arg4[%c0_48, %c160] : memref<16x480xf32, #tpu.memory_space<vmem>>, vector<16x16xf32>
    %c0_49 = arith.constant 0 : index
    %c10 = arith.constant 10 : index
    %79 = vector.load %arg5[%c0_49, %c10] : memref<16x30xf32, #tpu.memory_space<vmem>>, vector<16x1xf32>
    %cst_50 = arith.constant dense<0.000000e+00> : vector<16x128xf32>
    %80 = tpu.matmul %78, %77, %cst_50 {dimension_numbers = #tpu.dot_dimension_numbers<[1], [0], [0], [1], [0, 0, 1, 1], [], []>} : vector<16x16xf32>, vector<16x128xf32>, vector<16x128xf32> -> vector<16x128xf32>
    %81 = vector.broadcast %79 : vector<16x1xf32> to vector<16x128xf32>
    %82 = arith.addf %80, %81 : vector<16x128xf32>
    %cst_51 = arith.constant 0.000000e+00 : f32
    %83 = vector.broadcast %cst_51 : f32 to vector<16x128xf32>
    %84 = arith.maximumf %82, %83 : vector<16x128xf32>
    %c0_52 = arith.constant 0 : index
    %c176 = arith.constant 176 : index
    %85 = vector.load %arg4[%c0_52, %c176] : memref<16x480xf32, #tpu.memory_space<vmem>>, vector<16x16xf32>
    %c0_53 = arith.constant 0 : index
    %c11 = arith.constant 11 : index
    %86 = vector.load %arg5[%c0_53, %c11] : memref<16x30xf32, #tpu.memory_space<vmem>>, vector<16x1xf32>
    %cst_54 = arith.constant dense<0.000000e+00> : vector<16x128xf32>
    %87 = tpu.matmul %85, %84, %cst_54 {dimension_numbers = #tpu.dot_dimension_numbers<[1], [0], [0], [1], [0, 0, 1, 1], [], []>} : vector<16x16xf32>, vector<16x128xf32>, vector<16x128xf32> -> vector<16x128xf32>
    %88 = vector.broadcast %86 : vector<16x1xf32> to vector<16x128xf32>
    %89 = arith.addf %87, %88 : vector<16x128xf32>
    %cst_55 = arith.constant 0.000000e+00 : f32
    %90 = vector.broadcast %cst_55 : f32 to vector<16x128xf32>
    %91 = arith.maximumf %89, %90 : vector<16x128xf32>
    %c0_56 = arith.constant 0 : index
    %c192 = arith.constant 192 : index
    %92 = vector.load %arg4[%c0_56, %c192] : memref<16x480xf32, #tpu.memory_space<vmem>>, vector<16x16xf32>
    %c0_57 = arith.constant 0 : index
    %c12 = arith.constant 12 : index
    %93 = vector.load %arg5[%c0_57, %c12] : memref<16x30xf32, #tpu.memory_space<vmem>>, vector<16x1xf32>
    %cst_58 = arith.constant dense<0.000000e+00> : vector<16x128xf32>
    %94 = tpu.matmul %92, %91, %cst_58 {dimension_numbers = #tpu.dot_dimension_numbers<[1], [0], [0], [1], [0, 0, 1, 1], [], []>} : vector<16x16xf32>, vector<16x128xf32>, vector<16x128xf32> -> vector<16x128xf32>
    %95 = vector.broadcast %93 : vector<16x1xf32> to vector<16x128xf32>
    %96 = arith.addf %94, %95 : vector<16x128xf32>
    %cst_59 = arith.constant 0.000000e+00 : f32
    %97 = vector.broadcast %cst_59 : f32 to vector<16x128xf32>
    %98 = arith.maximumf %96, %97 : vector<16x128xf32>
    %c0_60 = arith.constant 0 : index
    %c208 = arith.constant 208 : index
    %99 = vector.load %arg4[%c0_60, %c208] : memref<16x480xf32, #tpu.memory_space<vmem>>, vector<16x16xf32>
    %c0_61 = arith.constant 0 : index
    %c13 = arith.constant 13 : index
    %100 = vector.load %arg5[%c0_61, %c13] : memref<16x30xf32, #tpu.memory_space<vmem>>, vector<16x1xf32>
    %cst_62 = arith.constant dense<0.000000e+00> : vector<16x128xf32>
    %101 = tpu.matmul %99, %98, %cst_62 {dimension_numbers = #tpu.dot_dimension_numbers<[1], [0], [0], [1], [0, 0, 1, 1], [], []>} : vector<16x16xf32>, vector<16x128xf32>, vector<16x128xf32> -> vector<16x128xf32>
    %102 = vector.broadcast %100 : vector<16x1xf32> to vector<16x128xf32>
    %103 = arith.addf %101, %102 : vector<16x128xf32>
    %cst_63 = arith.constant 0.000000e+00 : f32
    %104 = vector.broadcast %cst_63 : f32 to vector<16x128xf32>
    %105 = arith.maximumf %103, %104 : vector<16x128xf32>
    %c0_64 = arith.constant 0 : index
    %c224 = arith.constant 224 : index
    %106 = vector.load %arg4[%c0_64, %c224] : memref<16x480xf32, #tpu.memory_space<vmem>>, vector<16x16xf32>
    %c0_65 = arith.constant 0 : index
    %c14 = arith.constant 14 : index
    %107 = vector.load %arg5[%c0_65, %c14] : memref<16x30xf32, #tpu.memory_space<vmem>>, vector<16x1xf32>
    %cst_66 = arith.constant dense<0.000000e+00> : vector<16x128xf32>
    %108 = tpu.matmul %106, %105, %cst_66 {dimension_numbers = #tpu.dot_dimension_numbers<[1], [0], [0], [1], [0, 0, 1, 1], [], []>} : vector<16x16xf32>, vector<16x128xf32>, vector<16x128xf32> -> vector<16x128xf32>
    %109 = vector.broadcast %107 : vector<16x1xf32> to vector<16x128xf32>
    %110 = arith.addf %108, %109 : vector<16x128xf32>
    %cst_67 = arith.constant 0.000000e+00 : f32
    %111 = vector.broadcast %cst_67 : f32 to vector<16x128xf32>
    %112 = arith.maximumf %110, %111 : vector<16x128xf32>
    %c0_68 = arith.constant 0 : index
    %c240 = arith.constant 240 : index
    %113 = vector.load %arg4[%c0_68, %c240] : memref<16x480xf32, #tpu.memory_space<vmem>>, vector<16x16xf32>
    %c0_69 = arith.constant 0 : index
    %c15 = arith.constant 15 : index
    %114 = vector.load %arg5[%c0_69, %c15] : memref<16x30xf32, #tpu.memory_space<vmem>>, vector<16x1xf32>
    %cst_70 = arith.constant dense<0.000000e+00> : vector<16x128xf32>
    %115 = tpu.matmul %113, %112, %cst_70 {dimension_numbers = #tpu.dot_dimension_numbers<[1], [0], [0], [1], [0, 0, 1, 1], [], []>} : vector<16x16xf32>, vector<16x128xf32>, vector<16x128xf32> -> vector<16x128xf32>
    %116 = vector.broadcast %114 : vector<16x1xf32> to vector<16x128xf32>
    %117 = arith.addf %115, %116 : vector<16x128xf32>
    %cst_71 = arith.constant 0.000000e+00 : f32
    %118 = vector.broadcast %cst_71 : f32 to vector<16x128xf32>
    %119 = arith.maximumf %117, %118 : vector<16x128xf32>
    %c0_72 = arith.constant 0 : index
    %c256 = arith.constant 256 : index
    %120 = vector.load %arg4[%c0_72, %c256] : memref<16x480xf32, #tpu.memory_space<vmem>>, vector<16x16xf32>
    %c0_73 = arith.constant 0 : index
    %c16_74 = arith.constant 16 : index
    %121 = vector.load %arg5[%c0_73, %c16_74] : memref<16x30xf32, #tpu.memory_space<vmem>>, vector<16x1xf32>
    %cst_75 = arith.constant dense<0.000000e+00> : vector<16x128xf32>
    %122 = tpu.matmul %120, %119, %cst_75 {dimension_numbers = #tpu.dot_dimension_numbers<[1], [0], [0], [1], [0, 0, 1, 1], [], []>} : vector<16x16xf32>, vector<16x128xf32>, vector<16x128xf32> -> vector<16x128xf32>
    %123 = vector.broadcast %121 : vector<16x1xf32> to vector<16x128xf32>
    %124 = arith.addf %122, %123 : vector<16x128xf32>
    %cst_76 = arith.constant 0.000000e+00 : f32
    %125 = vector.broadcast %cst_76 : f32 to vector<16x128xf32>
    %126 = arith.maximumf %124, %125 : vector<16x128xf32>
    %c0_77 = arith.constant 0 : index
    %c272 = arith.constant 272 : index
    %127 = vector.load %arg4[%c0_77, %c272] : memref<16x480xf32, #tpu.memory_space<vmem>>, vector<16x16xf32>
    %c0_78 = arith.constant 0 : index
    %c17 = arith.constant 17 : index
    %128 = vector.load %arg5[%c0_78, %c17] : memref<16x30xf32, #tpu.memory_space<vmem>>, vector<16x1xf32>
    %cst_79 = arith.constant dense<0.000000e+00> : vector<16x128xf32>
    %129 = tpu.matmul %127, %126, %cst_79 {dimension_numbers = #tpu.dot_dimension_numbers<[1], [0], [0], [1], [0, 0, 1, 1], [], []>} : vector<16x16xf32>, vector<16x128xf32>, vector<16x128xf32> -> vector<16x128xf32>
    %130 = vector.broadcast %128 : vector<16x1xf32> to vector<16x128xf32>
    %131 = arith.addf %129, %130 : vector<16x128xf32>
    %cst_80 = arith.constant 0.000000e+00 : f32
    %132 = vector.broadcast %cst_80 : f32 to vector<16x128xf32>
    %133 = arith.maximumf %131, %132 : vector<16x128xf32>
    %c0_81 = arith.constant 0 : index
    %c288 = arith.constant 288 : index
    %134 = vector.load %arg4[%c0_81, %c288] : memref<16x480xf32, #tpu.memory_space<vmem>>, vector<16x16xf32>
    %c0_82 = arith.constant 0 : index
    %c18 = arith.constant 18 : index
    %135 = vector.load %arg5[%c0_82, %c18] : memref<16x30xf32, #tpu.memory_space<vmem>>, vector<16x1xf32>
    %cst_83 = arith.constant dense<0.000000e+00> : vector<16x128xf32>
    %136 = tpu.matmul %134, %133, %cst_83 {dimension_numbers = #tpu.dot_dimension_numbers<[1], [0], [0], [1], [0, 0, 1, 1], [], []>} : vector<16x16xf32>, vector<16x128xf32>, vector<16x128xf32> -> vector<16x128xf32>
    %137 = vector.broadcast %135 : vector<16x1xf32> to vector<16x128xf32>
    %138 = arith.addf %136, %137 : vector<16x128xf32>
    %cst_84 = arith.constant 0.000000e+00 : f32
    %139 = vector.broadcast %cst_84 : f32 to vector<16x128xf32>
    %140 = arith.maximumf %138, %139 : vector<16x128xf32>
    %c0_85 = arith.constant 0 : index
    %c304 = arith.constant 304 : index
    %141 = vector.load %arg4[%c0_85, %c304] : memref<16x480xf32, #tpu.memory_space<vmem>>, vector<16x16xf32>
    %c0_86 = arith.constant 0 : index
    %c19 = arith.constant 19 : index
    %142 = vector.load %arg5[%c0_86, %c19] : memref<16x30xf32, #tpu.memory_space<vmem>>, vector<16x1xf32>
    %cst_87 = arith.constant dense<0.000000e+00> : vector<16x128xf32>
    %143 = tpu.matmul %141, %140, %cst_87 {dimension_numbers = #tpu.dot_dimension_numbers<[1], [0], [0], [1], [0, 0, 1, 1], [], []>} : vector<16x16xf32>, vector<16x128xf32>, vector<16x128xf32> -> vector<16x128xf32>
    %144 = vector.broadcast %142 : vector<16x1xf32> to vector<16x128xf32>
    %145 = arith.addf %143, %144 : vector<16x128xf32>
    %cst_88 = arith.constant 0.000000e+00 : f32
    %146 = vector.broadcast %cst_88 : f32 to vector<16x128xf32>
    %147 = arith.maximumf %145, %146 : vector<16x128xf32>
    %c0_89 = arith.constant 0 : index
    %c320 = arith.constant 320 : index
    %148 = vector.load %arg4[%c0_89, %c320] : memref<16x480xf32, #tpu.memory_space<vmem>>, vector<16x16xf32>
    %c0_90 = arith.constant 0 : index
    %c20 = arith.constant 20 : index
    %149 = vector.load %arg5[%c0_90, %c20] : memref<16x30xf32, #tpu.memory_space<vmem>>, vector<16x1xf32>
    %cst_91 = arith.constant dense<0.000000e+00> : vector<16x128xf32>
    %150 = tpu.matmul %148, %147, %cst_91 {dimension_numbers = #tpu.dot_dimension_numbers<[1], [0], [0], [1], [0, 0, 1, 1], [], []>} : vector<16x16xf32>, vector<16x128xf32>, vector<16x128xf32> -> vector<16x128xf32>
    %151 = vector.broadcast %149 : vector<16x1xf32> to vector<16x128xf32>
    %152 = arith.addf %150, %151 : vector<16x128xf32>
    %cst_92 = arith.constant 0.000000e+00 : f32
    %153 = vector.broadcast %cst_92 : f32 to vector<16x128xf32>
    %154 = arith.maximumf %152, %153 : vector<16x128xf32>
    %c0_93 = arith.constant 0 : index
    %c336 = arith.constant 336 : index
    %155 = vector.load %arg4[%c0_93, %c336] : memref<16x480xf32, #tpu.memory_space<vmem>>, vector<16x16xf32>
    %c0_94 = arith.constant 0 : index
    %c21 = arith.constant 21 : index
    %156 = vector.load %arg5[%c0_94, %c21] : memref<16x30xf32, #tpu.memory_space<vmem>>, vector<16x1xf32>
    %cst_95 = arith.constant dense<0.000000e+00> : vector<16x128xf32>
    %157 = tpu.matmul %155, %154, %cst_95 {dimension_numbers = #tpu.dot_dimension_numbers<[1], [0], [0], [1], [0, 0, 1, 1], [], []>} : vector<16x16xf32>, vector<16x128xf32>, vector<16x128xf32> -> vector<16x128xf32>
    %158 = vector.broadcast %156 : vector<16x1xf32> to vector<16x128xf32>
    %159 = arith.addf %157, %158 : vector<16x128xf32>
    %cst_96 = arith.constant 0.000000e+00 : f32
    %160 = vector.broadcast %cst_96 : f32 to vector<16x128xf32>
    %161 = arith.maximumf %159, %160 : vector<16x128xf32>
    %c0_97 = arith.constant 0 : index
    %c352 = arith.constant 352 : index
    %162 = vector.load %arg4[%c0_97, %c352] : memref<16x480xf32, #tpu.memory_space<vmem>>, vector<16x16xf32>
    %c0_98 = arith.constant 0 : index
    %c22 = arith.constant 22 : index
    %163 = vector.load %arg5[%c0_98, %c22] : memref<16x30xf32, #tpu.memory_space<vmem>>, vector<16x1xf32>
    %cst_99 = arith.constant dense<0.000000e+00> : vector<16x128xf32>
    %164 = tpu.matmul %162, %161, %cst_99 {dimension_numbers = #tpu.dot_dimension_numbers<[1], [0], [0], [1], [0, 0, 1, 1], [], []>} : vector<16x16xf32>, vector<16x128xf32>, vector<16x128xf32> -> vector<16x128xf32>
    %165 = vector.broadcast %163 : vector<16x1xf32> to vector<16x128xf32>
    %166 = arith.addf %164, %165 : vector<16x128xf32>
    %cst_100 = arith.constant 0.000000e+00 : f32
    %167 = vector.broadcast %cst_100 : f32 to vector<16x128xf32>
    %168 = arith.maximumf %166, %167 : vector<16x128xf32>
    %c0_101 = arith.constant 0 : index
    %c368 = arith.constant 368 : index
    %169 = vector.load %arg4[%c0_101, %c368] : memref<16x480xf32, #tpu.memory_space<vmem>>, vector<16x16xf32>
    %c0_102 = arith.constant 0 : index
    %c23 = arith.constant 23 : index
    %170 = vector.load %arg5[%c0_102, %c23] : memref<16x30xf32, #tpu.memory_space<vmem>>, vector<16x1xf32>
    %cst_103 = arith.constant dense<0.000000e+00> : vector<16x128xf32>
    %171 = tpu.matmul %169, %168, %cst_103 {dimension_numbers = #tpu.dot_dimension_numbers<[1], [0], [0], [1], [0, 0, 1, 1], [], []>} : vector<16x16xf32>, vector<16x128xf32>, vector<16x128xf32> -> vector<16x128xf32>
    %172 = vector.broadcast %170 : vector<16x1xf32> to vector<16x128xf32>
    %173 = arith.addf %171, %172 : vector<16x128xf32>
    %cst_104 = arith.constant 0.000000e+00 : f32
    %174 = vector.broadcast %cst_104 : f32 to vector<16x128xf32>
    %175 = arith.maximumf %173, %174 : vector<16x128xf32>
    %c0_105 = arith.constant 0 : index
    %c384 = arith.constant 384 : index
    %176 = vector.load %arg4[%c0_105, %c384] : memref<16x480xf32, #tpu.memory_space<vmem>>, vector<16x16xf32>
    %c0_106 = arith.constant 0 : index
    %c24 = arith.constant 24 : index
    %177 = vector.load %arg5[%c0_106, %c24] : memref<16x30xf32, #tpu.memory_space<vmem>>, vector<16x1xf32>
    %cst_107 = arith.constant dense<0.000000e+00> : vector<16x128xf32>
    %178 = tpu.matmul %176, %175, %cst_107 {dimension_numbers = #tpu.dot_dimension_numbers<[1], [0], [0], [1], [0, 0, 1, 1], [], []>} : vector<16x16xf32>, vector<16x128xf32>, vector<16x128xf32> -> vector<16x128xf32>
    %179 = vector.broadcast %177 : vector<16x1xf32> to vector<16x128xf32>
    %180 = arith.addf %178, %179 : vector<16x128xf32>
    %cst_108 = arith.constant 0.000000e+00 : f32
    %181 = vector.broadcast %cst_108 : f32 to vector<16x128xf32>
    %182 = arith.maximumf %180, %181 : vector<16x128xf32>
    %c0_109 = arith.constant 0 : index
    %c400 = arith.constant 400 : index
    %183 = vector.load %arg4[%c0_109, %c400] : memref<16x480xf32, #tpu.memory_space<vmem>>, vector<16x16xf32>
    %c0_110 = arith.constant 0 : index
    %c25 = arith.constant 25 : index
    %184 = vector.load %arg5[%c0_110, %c25] : memref<16x30xf32, #tpu.memory_space<vmem>>, vector<16x1xf32>
    %cst_111 = arith.constant dense<0.000000e+00> : vector<16x128xf32>
    %185 = tpu.matmul %183, %182, %cst_111 {dimension_numbers = #tpu.dot_dimension_numbers<[1], [0], [0], [1], [0, 0, 1, 1], [], []>} : vector<16x16xf32>, vector<16x128xf32>, vector<16x128xf32> -> vector<16x128xf32>
    %186 = vector.broadcast %184 : vector<16x1xf32> to vector<16x128xf32>
    %187 = arith.addf %185, %186 : vector<16x128xf32>
    %cst_112 = arith.constant 0.000000e+00 : f32
    %188 = vector.broadcast %cst_112 : f32 to vector<16x128xf32>
    %189 = arith.maximumf %187, %188 : vector<16x128xf32>
    %c0_113 = arith.constant 0 : index
    %c416 = arith.constant 416 : index
    %190 = vector.load %arg4[%c0_113, %c416] : memref<16x480xf32, #tpu.memory_space<vmem>>, vector<16x16xf32>
    %c0_114 = arith.constant 0 : index
    %c26 = arith.constant 26 : index
    %191 = vector.load %arg5[%c0_114, %c26] : memref<16x30xf32, #tpu.memory_space<vmem>>, vector<16x1xf32>
    %cst_115 = arith.constant dense<0.000000e+00> : vector<16x128xf32>
    %192 = tpu.matmul %190, %189, %cst_115 {dimension_numbers = #tpu.dot_dimension_numbers<[1], [0], [0], [1], [0, 0, 1, 1], [], []>} : vector<16x16xf32>, vector<16x128xf32>, vector<16x128xf32> -> vector<16x128xf32>
    %193 = vector.broadcast %191 : vector<16x1xf32> to vector<16x128xf32>
    %194 = arith.addf %192, %193 : vector<16x128xf32>
    %cst_116 = arith.constant 0.000000e+00 : f32
    %195 = vector.broadcast %cst_116 : f32 to vector<16x128xf32>
    %196 = arith.maximumf %194, %195 : vector<16x128xf32>
    %c0_117 = arith.constant 0 : index
    %c432 = arith.constant 432 : index
    %197 = vector.load %arg4[%c0_117, %c432] : memref<16x480xf32, #tpu.memory_space<vmem>>, vector<16x16xf32>
    %c0_118 = arith.constant 0 : index
    %c27 = arith.constant 27 : index
    %198 = vector.load %arg5[%c0_118, %c27] : memref<16x30xf32, #tpu.memory_space<vmem>>, vector<16x1xf32>
    %cst_119 = arith.constant dense<0.000000e+00> : vector<16x128xf32>
    %199 = tpu.matmul %197, %196, %cst_119 {dimension_numbers = #tpu.dot_dimension_numbers<[1], [0], [0], [1], [0, 0, 1, 1], [], []>} : vector<16x16xf32>, vector<16x128xf32>, vector<16x128xf32> -> vector<16x128xf32>
    %200 = vector.broadcast %198 : vector<16x1xf32> to vector<16x128xf32>
    %201 = arith.addf %199, %200 : vector<16x128xf32>
    %cst_120 = arith.constant 0.000000e+00 : f32
    %202 = vector.broadcast %cst_120 : f32 to vector<16x128xf32>
    %203 = arith.maximumf %201, %202 : vector<16x128xf32>
    %c0_121 = arith.constant 0 : index
    %c448 = arith.constant 448 : index
    %204 = vector.load %arg4[%c0_121, %c448] : memref<16x480xf32, #tpu.memory_space<vmem>>, vector<16x16xf32>
    %c0_122 = arith.constant 0 : index
    %c28 = arith.constant 28 : index
    %205 = vector.load %arg5[%c0_122, %c28] : memref<16x30xf32, #tpu.memory_space<vmem>>, vector<16x1xf32>
    %cst_123 = arith.constant dense<0.000000e+00> : vector<16x128xf32>
    %206 = tpu.matmul %204, %203, %cst_123 {dimension_numbers = #tpu.dot_dimension_numbers<[1], [0], [0], [1], [0, 0, 1, 1], [], []>} : vector<16x16xf32>, vector<16x128xf32>, vector<16x128xf32> -> vector<16x128xf32>
    %207 = vector.broadcast %205 : vector<16x1xf32> to vector<16x128xf32>
    %208 = arith.addf %206, %207 : vector<16x128xf32>
    %cst_124 = arith.constant 0.000000e+00 : f32
    %209 = vector.broadcast %cst_124 : f32 to vector<16x128xf32>
    %210 = arith.maximumf %208, %209 : vector<16x128xf32>
    %c0_125 = arith.constant 0 : index
    %c464 = arith.constant 464 : index
    %211 = vector.load %arg4[%c0_125, %c464] : memref<16x480xf32, #tpu.memory_space<vmem>>, vector<16x16xf32>
    %c0_126 = arith.constant 0 : index
    %c29 = arith.constant 29 : index
    %212 = vector.load %arg5[%c0_126, %c29] : memref<16x30xf32, #tpu.memory_space<vmem>>, vector<16x1xf32>
    %cst_127 = arith.constant dense<0.000000e+00> : vector<16x128xf32>
    %213 = tpu.matmul %211, %210, %cst_127 {dimension_numbers = #tpu.dot_dimension_numbers<[1], [0], [0], [1], [0, 0, 1, 1], [], []>} : vector<16x16xf32>, vector<16x128xf32>, vector<16x128xf32> -> vector<16x128xf32>
    %214 = vector.broadcast %212 : vector<16x1xf32> to vector<16x128xf32>
    %215 = arith.addf %213, %214 : vector<16x128xf32>
    %cst_128 = arith.constant 0.000000e+00 : f32
    %216 = vector.broadcast %cst_128 : f32 to vector<16x128xf32>
    %217 = arith.maximumf %215, %216 : vector<16x128xf32>
    %c0_129 = arith.constant 0 : index
    %c0_130 = arith.constant 0 : index
    %218 = vector.load %arg6[%c0_129, %c0_130] : memref<1x16xf32, #tpu.memory_space<vmem>>, vector<1x16xf32>
    %cst_131 = arith.constant dense<0.000000e+00> : vector<1x128xf32>
    %219 = tpu.matmul %218, %217, %cst_131 {dimension_numbers = #tpu.dot_dimension_numbers<[1], [0], [0], [1], [0, 0, 1, 1], [], []>} : vector<1x16xf32>, vector<16x128xf32>, vector<1x128xf32> -> vector<1x128xf32>
    %c0_132 = arith.constant 0 : index
    %c0_133 = arith.constant 0 : index
    %220 = vector.load %arg7[%c0_132, %c0_133] : memref<1x1xf32, #tpu.memory_space<vmem>>, vector<1x1xf32>
    %221 = vector.broadcast %220 : vector<1x1xf32> to vector<1x128xf32>
    %222 = arith.addf %219, %221 : vector<1x128xf32>
    %c0_134 = arith.constant 0 : index
    %c0_135 = arith.constant 0 : index
    %223 = vector.load %arg8[%c0_134, %c0_135] : memref<1x128xf32, #tpu.memory_space<vmem>>, vector<1x128xf32>
    tpu.vector_store %arg8[%c0_134, %c0_135], %222 {strides = array<i32>} : memref<1x128xf32, #tpu.memory_space<vmem>>, vector<1x128xf32>,
    return
  }
  func.func @transform_0(%arg0: i32) -> (i32, i32) {
    %c0_i32 = arith.constant 0 : i32
    %c0_i32_0 = arith.constant 0 : i32
    return %c0_i32, %arg0 : i32, i32
  }
  func.func @transform_1(%arg0: i32) -> (i32, i32) {
    %c0_i32 = arith.constant 0 : i32
    %c0_i32_0 = arith.constant 0 : i32
    %c0_i32_1 = arith.constant 0 : i32
    return %c0_i32, %c0_i32_0 : i32, i32
  }
  func.func @transform_2(%arg0: i32) -> (i32, i32) {
    %c0_i32 = arith.constant 0 : i32
    %c0_i32_0 = arith.constant 0 : i32
    %c0_i32_1 = arith.constant 0 : i32
    return %c0_i32, %c0_i32_0 : i32, i32
  }
  func.func @transform_3(%arg0: i32) -> (i32, i32) {
    %c0_i32 = arith.constant 0 : i32
    %c0_i32_0 = arith.constant 0 : i32
    %c0_i32_1 = arith.constant 0 : i32
    return %c0_i32, %c0_i32_0 : i32, i32
  }
  func.func @transform_4(%arg0: i32) -> (i32, i32) {
    %c0_i32 = arith.constant 0 : i32
    %c0_i32_0 = arith.constant 0 : i32
    %c0_i32_1 = arith.constant 0 : i32
    return %c0_i32, %c0_i32_0 : i32, i32
  }
  func.func @transform_5(%arg0: i32) -> (i32, i32) {
    %c0_i32 = arith.constant 0 : i32
    %c0_i32_0 = arith.constant 0 : i32
    %c0_i32_1 = arith.constant 0 : i32
    return %c0_i32, %c0_i32_0 : i32, i32
  }
  func.func @transform_6(%arg0: i32) -> (i32, i32) {
    %c0_i32 = arith.constant 0 : i32
    %c0_i32_0 = arith.constant 0 : i32
    %c0_i32_1 = arith.constant 0 : i32
    return %c0_i32, %c0_i32_0 : i32, i32
  }
  func.func @transform_7(%arg0: i32) -> (i32, i32) {
    %c0_i32 = arith.constant 0 : i32
    %c0_i32_0 = arith.constant 0 : i32
    return %c0_i32, %arg0 : i32, i32
  }
}

</mosaic_0001>

<llo_original>
// kernel: mlp_forward.1
$region0: #{mlp_forward.1}
  #allocation0 [shape = 'u32[]', space=smem, size = 0x4, offset = 0x4, fixed_abs, tag = 'smem constant byte address 0x4 - core index']
  #allocation1 [shape = 'u32[72,128]{1,0:T(1,128)}', space=vmem, size = 0x9000, scoped, tag = 'internal scratch']
  #allocation2 [shape = 'f32[1,1]{1,0:T(1,128)S(1)}', space=vmem, size = 0x200, scoped, tag = 'scoped memory for mlp_forward.1']
  %s0 = inlined_call_operand.vmem [shape: f32[16,128], index: 0, kind: input, shape index: {}]
  %s1 = inlined_call_operand.vmem [shape: f32[16,16], index: 1, kind: input, shape index: {}]
  %s2 = inlined_call_operand.vmem [shape: f32[16,1], index: 2, kind: input, shape index: {}]
  %s3 = inlined_call_operand.vmem [shape: f32[16,480], index: 3, kind: input, shape index: {}]
  %s4 = inlined_call_operand.vmem [shape: f32[16,30], index: 4, kind: input, shape index: {}]
  %s5 = inlined_call_operand.vmem [shape: f32[1,16], index: 5, kind: input, shape index: {}]
  %s6 = inlined_call_operand.<no memory space> [shape: f32[1,1], index: 6, kind: input, shape index: {}]
  %s7 = inlined_call_operand.vmem [shape: f32[1,128], index: 7, kind: output, shape index: {}]
  %s8 = sld [smem:[#allocation0]]
  $region38: #{mlp_forward.1} parent=0
    _
  %s10 = ssub.s32 1, %s8
  %s11 = scalar_select 0, %s10, %s8
  %v12 = vstv %s6
  %13 = vst [vmem:[#allocation2] sm:$0x1] %v12
  // Predicated region
  $region2: #{mlp_forward.1} parent=0 // pred_check
    _
  $region3: #{mlp_forward.1} parent=0 // pred_check_branch
    %15 = sbr.rel (0) target = $region5
  $region4: #{mlp_forward.1} parent=0 // pred_region
    _
  $region5: #{mlp_forward.1} parent=0 // pred_fallthru
    _
  // Predicated region
  $region6: #{mlp_forward.1} parent=0 // pred_check
    _
  $region7: #{mlp_forward.1} parent=0 // pred_check_branch
    %17 = sbr.rel (0) target = $region9
  $region8: #{mlp_forward.1} parent=0 // pred_region
    _
  $region9: #{mlp_forward.1} parent=0 // pred_fallthru
    _
  // Predicated region
  $region10: #{mlp_forward.1} parent=0 // pred_check
    _
  $region11: #{mlp_forward.1} parent=0 // pred_check_branch
    %19 = sbr.rel (0) target = $region13
  $region12: #{mlp_forward.1} parent=0 // pred_region
    _
  $region13: #{mlp_forward.1} parent=0 // pred_fallthru
    _
  // Predicated region
  $region14: #{mlp_forward.1} parent=0 // pred_check
    _
  $region15: #{mlp_forward.1} parent=0 // pred_check_branch
    %21 = sbr.rel (0) target = $region17
  $region16: #{mlp_forward.1} parent=0 // pred_region
    _
  $region17: #{mlp_forward.1} parent=0 // pred_fallthru
    _
  // Predicated region
  $region18: #{mlp_forward.1} parent=0 // pred_check
    _
  $region19: #{mlp_forward.1} parent=0 // pred_check_branch
    %23 = sbr.rel (0) target = $region21
  $region20: #{mlp_forward.1} parent=0 // pred_region
    _
  $region21: #{mlp_forward.1} parent=0 // pred_fallthru
    _
  // Predicated region
  $region22: #{mlp_forward.1} parent=0 // pred_check
    _
  $region23: #{mlp_forward.1} parent=0 // pred_check_branch
    %25 = sbr.rel (0) target = $region25
  $region24: #{mlp_forward.1} parent=0 // pred_region
    _
  $region25: #{mlp_forward.1} parent=0 // pred_fallthru
    _
  // Predicated region
  $region26: #{mlp_forward.1} parent=0 // pred_check
    _
  $region27: #{mlp_forward.1} parent=0 // pred_check_branch
    %27 = sbr.rel (0) target = $region29
  $region28: #{mlp_forward.1} parent=0 // pred_region
    _
  $region29: #{mlp_forward.1} parent=0 // pred_fallthru
    _
  %v28 = vld [vmem:[%s0] sm:$0xff]
  %v29 = vld [vmem:[%s0 + $0x8] sm:$0xff]
  %v30 = vld [vmem:[%s1] sm:$0xff]
  %v31 = vld [vmem:[%s1 + $0x8] sm:$0xff]
  %v32 = vld [vmem:[%s2] sm:$0xff]
  %v33 = vld [vmem:[%s2 + $0x8] sm:$0xff]
  %35 = vset.pattern.permute.xlu0 0
  %36 = vperm.xlu0 %35, %v32
  %v37 = vpop.permute.xlu0 %36
  %40 = vset.pattern.permute.xlu0 0
  %41 = vperm.xlu0 %40, %v33
  %v42 = vpop.permute.xlu0 %41
  %vm44 = vcmask 130048
  %v46 = vsel %vm44, %v30, 0
  %v49 = vsel %vm44, %v31, 0
  %51 = vmatpush.msra.mxu0 0.0
  %52 = vmatpush.msra.mxu0 0.0
  %53 = vmatpush.msra.mxu0 0.0
  %54 = vmatpush.msra.mxu0 0.0
  %55 = vmatpush.msra.mxu0 0.0
  %56 = vmatpush.msra.mxu0 0.0
  %57 = vmatpush.msra.mxu0 0.0
  %58 = vmatpush.msra.mxu0 0.0
  %59 = vmatpush.msra.mxu0 0.0
  %60 = vmatpush.msra.mxu0 0.0
  %61 = vmatpush.msra.mxu0 0.0
  %62 = vmatpush.msra.mxu0 0.0
  %63 = vmatpush.msra.mxu0 0.0
  %64 = vmatpush.msra.mxu0 0.0
  %65 = vmatpush.msra.mxu0 %v29
  %66 = vmatpush.msra.mxu0 %v28
  %67 = vmatmul.f32.gmra.mxu0 %v46
  %v68 = vpop.f32.mrf.mxu0
  %v69 = vadd.f32 %v37, %v68
  %70 = vmatmul.f32.gmra.mxu0 %v49
  %v71 = vpop.f32.mrf.mxu0
  %v72 = vadd.f32 %v42, %v71
  %73 = vdwg.mxu0
  %v74 = vmax.f32 %v69, 0.0
  %v75 = vmax.f32 %v72, 0.0
  %v76 = vld [vmem:[%s3] sm:$0xff]
  %v77 = vld [vmem:[%s3 + $0x20] sm:$0xff]
  %v78 = vld [vmem:[%s4] sm:$0xff]
  %v79 = vld [vmem:[%s4 + $0x8] sm:$0xff]
  %81 = vset.pattern.permute.xlu0 0
  %82 = vperm.xlu0 %81, %v78
  %v83 = vpop.permute.xlu0 %82
  %86 = vset.pattern.permute.xlu0 0
  %87 = vperm.xlu0 %86, %v79
  %v88 = vpop.permute.xlu0 %87
  %v91 = vsel %vm44, %v76, 0
  %v94 = vsel %vm44, %v77, 0
  %96 = vmatpush.msra.mxu0 0.0
  %97 = vmatpush.msra.mxu0 0.0
  %98 = vmatpush.msra.mxu0 0.0
  %99 = vmatpush.msra.mxu0 0.0
  %100 = vmatpush.msra.mxu0 0.0
  %101 = vmatpush.msra.mxu0 0.0
  %102 = vmatpush.msra.mxu0 0.0
  %103 = vmatpush.msra.mxu0 0.0
  %104 = vmatpush.msra.mxu0 0.0
  %105 = vmatpush.msra.mxu0 0.0
  %106 = vmatpush.msra.mxu0 0.0
  %107 = vmatpush.msra.mxu0 0.0
  %108 = vmatpush.msra.mxu0 0.0
  %109 = vmatpush.msra.mxu0 0.0
  %110 = vmatpush.msra.mxu0 %v75
  %111 = vmatpush.msra.mxu0 %v74
  %112 = vmatmul.f32.gmra.mxu0 %v91
  %v113 = vpop.f32.mrf.mxu0
  %v114 = vadd.f32 %v83, %v113
  %115 = vmatmul.f32.gmra.mxu0 %v94
  %v116 = vpop.f32.mrf.mxu0
  %v117 = vadd.f32 %v88, %v116
  %118 = vdwg.mxu0
  %v119 = vmax.f32 %v114, 0.0
  %v120 = vmax.f32 %v117, 0.0
  %121 = vset.pattern.permute.xlu0 1
  %122 = vperm.xlu0 %121, %v78
  %v123 = vpop.permute.xlu0 %122
  %125 = vset.pattern.permute.xlu0 1
  %126 = vperm.xlu0 %125, %v79
  %v127 = vpop.permute.xlu0 %126
  %129 = vrot.lane.b32.xlu0 %v76, 112
  %v130 = vpop.permute.xlu0 %129
  %131 = vrot.lane.b32.xlu0 %v77, 112
  %v132 = vpop.permute.xlu0 %131
  %v133 = vsel %vm44, %v130, 0
  %v135 = vsel %vm44, %v132, 0
  %137 = vmatpush.msra.mxu0 0.0
  %138 = vmatpush.msra.mxu0 0.0
  %139 = vmatpush.msra.mxu0 0.0
  %140 = vmatpush.msra.mxu0 0.0
  %141 = vmatpush.msra.mxu0 0.0
  %142 = vmatpush.msra.mxu0 0.0
  %143 = vmatpush.msra.mxu0 0.0
  %144 = vmatpush.msra.mxu0 0.0
  %145 = vmatpush.msra.mxu0 0.0
  %146 = vmatpush.msra.mxu0 0.0
  %147 = vmatpush.msra.mxu0 0.0
  %148 = vmatpush.msra.mxu0 0.0
  %149 = vmatpush.msra.mxu0 0.0
  %150 = vmatpush.msra.mxu0 0.0
  %151 = vmatpush.msra.mxu0 %v120
  %152 = vmatpush.msra.mxu0 %v119
  %153 = vmatmul.f32.gmra.mxu0 %v133
  %v154 = vpop.f32.mrf.mxu0
  %v155 = vadd.f32 %v123, %v154
  %156 = vmatmul.f32.gmra.mxu0 %v135
  %v157 = vpop.f32.mrf.mxu0
  %v158 = vadd.f32 %v127, %v157
  %159 = vdwg.mxu0
  %v160 = vmax.f32 %v155, 0.0
  %v161 = vmax.f32 %v158, 0.0
  %162 = vset.pattern.permute.xlu0 2
  %163 = vperm.xlu0 %162, %v78
  %v164 = vpop.permute.xlu0 %163
  %166 = vset.pattern.permute.xlu0 2
  %167 = vperm.xlu0 %166, %v79
  %v168 = vpop.permute.xlu0 %167
  %170 = vrot.lane.b32.xlu0 %v76, 96
  %v171 = vpop.permute.xlu0 %170
  %172 = vrot.lane.b32.xlu0 %v77, 96
  %v173 = vpop.permute.xlu0 %172
  %v174 = vsel %vm44, %v171, 0
  %v176 = vsel %vm44, %v173, 0
  %178 = vmatpush.msra.mxu0 0.0
  %179 = vmatpush.msra.mxu0 0.0
  %180 = vmatpush.msra.mxu0 0.0
  %181 = vmatpush.msra.mxu0 0.0
  %182 = vmatpush.msra.mxu0 0.0
  %183 = vmatpush.msra.mxu0 0.0
  %184 = vmatpush.msra.mxu0 0.0
  %185 = vmatpush.msra.mxu0 0.0
  %186 = vmatpush.msra.mxu0 0.0
  %187 = vmatpush.msra.mxu0 0.0
  %188 = vmatpush.msra.mxu0 0.0
  %189 = vmatpush.msra.mxu0 0.0
  %190 = vmatpush.msra.mxu0 0.0
  %191 = vmatpush.msra.mxu0 0.0
  %192 = vmatpush.msra.mxu0 %v161
  %193 = vmatpush.msra.mxu0 %v160
  %194 = vmatmul.f32.gmra.mxu0 %v174
  %v195 = vpop.f32.mrf.mxu0
  %v196 = vadd.f32 %v164, %v195
  %197 = vmatmul.f32.gmra.mxu0 %v176
  %v198 = vpop.f32.mrf.mxu0
  %v199 = vadd.f32 %v168, %v198
  %200 = vdwg.mxu0
  %v201 = vmax.f32 %v196, 0.0
  %v202 = vmax.f32 %v199, 0.0
  %203 = vset.pattern.permute.xlu0 3
  %204 = vperm.xlu0 %203, %v78
  %v205 = vpop.permute.xlu0 %204
  %207 = vset.pattern.permute.xlu0 3
  %208 = vperm.xlu0 %207, %v79
  %v209 = vpop.permute.xlu0 %208
  %211 = vrot.lane.b32.xlu0 %v76, 80
  %v212 = vpop.permute.xlu0 %211
  %213 = vrot.lane.b32.xlu0 %v77, 80
  %v214 = vpop.permute.xlu0 %213
  %v215 = vsel %vm44, %v212, 0
  %v217 = vsel %vm44, %v214, 0
  %219 = vmatpush.msra.mxu0 0.0
  %220 = vmatpush.msra.mxu0 0.0
  %221 = vmatpush.msra.mxu0 0.0
  %222 = vmatpush.msra.mxu0 0.0
  %223 = vmatpush.msra.mxu0 0.0
  %224 = vmatpush.msra.mxu0 0.0
  %225 = vmatpush.msra.mxu0 0.0
  %226 = vmatpush.msra.mxu0 0.0
  %227 = vmatpush.msra.mxu0 0.0
  %228 = vmatpush.msra.mxu0 0.0
  %229 = vmatpush.msra.mxu0 0.0
  %230 = vmatpush.msra.mxu0 0.0
  %231 = vmatpush.msra.mxu0 0.0
  %232 = vmatpush.msra.mxu0 0.0
  %233 = vmatpush.msra.mxu0 %v202
  %234 = vmatpush.msra.mxu0 %v201
  %235 = vmatmul.f32.gmra.mxu0 %v215
  %v236 = vpop.f32.mrf.mxu0
  %v237 = vadd.f32 %v205, %v236
  %238 = vmatmul.f32.gmra.mxu0 %v217
  %v239 = vpop.f32.mrf.mxu0
  %v240 = vadd.f32 %v209, %v239
  %241 = vdwg.mxu0
  %v242 = vmax.f32 %v237, 0.0
  %v243 = vmax.f32 %v240, 0.0
  %244 = vset.pattern.permute.xlu0 4
  %245 = vperm.xlu0 %244, %v78
  %v246 = vpop.permute.xlu0 %245
  %248 = vset.pattern.permute.xlu0 4
  %249 = vperm.xlu0 %248, %v79
  %v250 = vpop.permute.xlu0 %249
  %252 = vrot.lane.b32.xlu0 %v76, 64
  %v253 = vpop.permute.xlu0 %252
  %254 = vrot.lane.b32.xlu0 %v77, 64
  %v255 = vpop.permute.xlu0 %254
  %v256 = vsel %vm44, %v253, 0
  %v258 = vsel %vm44, %v255, 0
  %260 = vmatpush.msra.mxu0 0.0
  %261 = vmatpush.msra.mxu0 0.0
  %262 = vmatpush.msra.mxu0 0.0
  %263 = vmatpush.msra.mxu0 0.0
  %264 = vmatpush.msra.mxu0 0.0
  %265 = vmatpush.msra.mxu0 0.0
  %266 = vmatpush.msra.mxu0 0.0
  %267 = vmatpush.msra.mxu0 0.0
  %268 = vmatpush.msra.mxu0 0.0
  %269 = vmatpush.msra.mxu0 0.0
  %270 = vmatpush.msra.mxu0 0.0
  %271 = vmatpush.msra.mxu0 0.0
  %272 = vmatpush.msra.mxu0 0.0
  %273 = vmatpush.msra.mxu0 0.0
  %274 = vmatpush.msra.mxu0 %v243
  %275 = vmatpush.msra.mxu0 %v242
  %276 = vmatmul.f32.gmra.mxu0 %v256
  %v277 = vpop.f32.mrf.mxu0
  %v278 = vadd.f32 %v246, %v277
  %279 = vmatmul.f32.gmra.mxu0 %v258
  %v280 = vpop.f32.mrf.mxu0
  %v281 = vadd.f32 %v250, %v280
  %282 = vdwg.mxu0
  %v283 = vmax.f32 %v278, 0.0
  %v284 = vmax.f32 %v281, 0.0
  %285 = vset.pattern.permute.xlu0 5
  %286 = vperm.xlu0 %285, %v78
  %v287 = vpop.permute.xlu0 %286
  %289 = vset.pattern.permute.xlu0 5
  %290 = vperm.xlu0 %289, %v79
  %v291 = vpop.permute.xlu0 %290
  %293 = vrot.lane.b32.xlu0 %v76, 48
  %v294 = vpop.permute.xlu0 %293
  %295 = vrot.lane.b32.xlu0 %v77, 48
  %v296 = vpop.permute.xlu0 %295
  %v297 = vsel %vm44, %v294, 0
  %v299 = vsel %vm44, %v296, 0
  %301 = vmatpush.msra.mxu0 0.0
  %302 = vmatpush.msra.mxu0 0.0
  %303 = vmatpush.msra.mxu0 0.0
  %304 = vmatpush.msra.mxu0 0.0
  %305 = vmatpush.msra.mxu0 0.0
  %306 = vmatpush.msra.mxu0 0.0
  %307 = vmatpush.msra.mxu0 0.0
  %308 = vmatpush.msra.mxu0 0.0
  %309 = vmatpush.msra.mxu0 0.0
  %310 = vmatpush.msra.mxu0 0.0
  %311 = vmatpush.msra.mxu0 0.0
  %312 = vmatpush.msra.mxu0 0.0
  %313 = vmatpush.msra.mxu0 0.0
  %314 = vmatpush.msra.mxu0 0.0
  %315 = vmatpush.msra.mxu0 %v284
  %316 = vmatpush.msra.mxu0 %v283
  %317 = vmatmul.f32.gmra.mxu0 %v297
  %v318 = vpop.f32.mrf.mxu0
  %v319 = vadd.f32 %v287, %v318
  %320 = vmatmul.f32.gmra.mxu0 %v299
  %v321 = vpop.f32.mrf.mxu0
  %v322 = vadd.f32 %v291, %v321
  %323 = vdwg.mxu0
  %v324 = vmax.f32 %v319, 0.0
  %v325 = vmax.f32 %v322, 0.0
  %326 = vset.pattern.permute.xlu0 6
  %327 = vperm.xlu0 %326, %v78
  %v328 = vpop.permute.xlu0 %327
  %330 = vset.pattern.permute.xlu0 6
  %331 = vperm.xlu0 %330, %v79
  %v332 = vpop.permute.xlu0 %331
  %334 = vrot.lane.b32.xlu0 %v76, 32
  %v335 = vpop.permute.xlu0 %334
  %336 = vrot.lane.b32.xlu0 %v77, 32
  %v337 = vpop.permute.xlu0 %336
  %v338 = vsel %vm44, %v335, 0
  %v340 = vsel %vm44, %v337, 0
  %342 = vmatpush.msra.mxu0 0.0
  %343 = vmatpush.msra.mxu0 0.0
  %344 = vmatpush.msra.mxu0 0.0
  %345 = vmatpush.msra.mxu0 0.0
  %346 = vmatpush.msra.mxu0 0.0
  %347 = vmatpush.msra.mxu0 0.0
  %348 = vmatpush.msra.mxu0 0.0
  %349 = vmatpush.msra.mxu0 0.0
  %350 = vmatpush.msra.mxu0 0.0
  %351 = vmatpush.msra.mxu0 0.0
  %352 = vmatpush.msra.mxu0 0.0
  %353 = vmatpush.msra.mxu0 0.0
  %354 = vmatpush.msra.mxu0 0.0
  %355 = vmatpush.msra.mxu0 0.0
  %356 = vmatpush.msra.mxu0 %v325
  %357 = vmatpush.msra.mxu0 %v324
  %358 = vmatmul.f32.gmra.mxu0 %v338
  %v359 = vpop.f32.mrf.mxu0
  %v360 = vadd.f32 %v328, %v359
  %361 = vmatmul.f32.gmra.mxu0 %v340
  %v362 = vpop.f32.mrf.mxu0
  %v363 = vadd.f32 %v332, %v362
  %364 = vdwg.mxu0
  %v365 = vmax.f32 %v360, 0.0
  %v366 = vmax.f32 %v363, 0.0
  %367 = vset.pattern.permute.xlu0 7
  %368 = vperm.xlu0 %367, %v78
  %v369 = vpop.permute.xlu0 %368
  %371 = vset.pattern.permute.xlu0 7
  %372 = vperm.xlu0 %371, %v79
  %v373 = vpop.permute.xlu0 %372
  %375 = vrot.lane.b32.xlu0 %v76, 16
  %v376 = vpop.permute.xlu0 %375
  %377 = vrot.lane.b32.xlu0 %v77, 16
  %v378 = vpop.permute.xlu0 %377
  %v379 = vsel %vm44, %v376, 0
  %v381 = vsel %vm44, %v378, 0
  %383 = vmatpush.msra.mxu0 0.0
  %384 = vmatpush.msra.mxu0 0.0
  %385 = vmatpush.msra.mxu0 0.0
  %386 = vmatpush.msra.mxu0 0.0
  %387 = vmatpush.msra.mxu0 0.0
  %388 = vmatpush.msra.mxu0 0.0
  %389 = vmatpush.msra.mxu0 0.0
  %390 = vmatpush.msra.mxu0 0.0
  %391 = vmatpush.msra.mxu0 0.0
  %392 = vmatpush.msra.mxu0 0.0
  %393 = vmatpush.msra.mxu0 0.0
  %394 = vmatpush.msra.mxu0 0.0
  %395 = vmatpush.msra.mxu0 0.0
  %396 = vmatpush.msra.mxu0 0.0
  %397 = vmatpush.msra.mxu0 %v366
  %398 = vmatpush.msra.mxu0 %v365
  %399 = vmatmul.f32.gmra.mxu0 %v379
  %v400 = vpop.f32.mrf.mxu0
  %v401 = vadd.f32 %v369, %v400
  %402 = vmatmul.f32.gmra.mxu0 %v381
  %v403 = vpop.f32.mrf.mxu0
  %v404 = vadd.f32 %v373, %v403
  %405 = vdwg.mxu0
  %v406 = vmax.f32 %v401, 0.0
  %v407 = vmax.f32 %v404, 0.0
  %v408 = vld [vmem:[%s3 + $0x8] sm:$0xff]
  %v409 = vld [vmem:[%s3 + $0x28] sm:$0xff]
  %410 = vset.pattern.permute.xlu0 8
  %411 = vperm.xlu0 %410, %v78
  %v412 = vpop.permute.xlu0 %411
  %414 = vset.pattern.permute.xlu0 8
  %415 = vperm.xlu0 %414, %v79
  %v416 = vpop.permute.xlu0 %415
  %v419 = vsel %vm44, %v408, 0
  %v422 = vsel %vm44, %v409, 0
  %424 = vmatpush.msra.mxu0 0.0
  %425 = vmatpush.msra.mxu0 0.0
  %426 = vmatpush.msra.mxu0 0.0
  %427 = vmatpush.msra.mxu0 0.0
  %428 = vmatpush.msra.mxu0 0.0
  %429 = vmatpush.msra.mxu0 0.0
  %430 = vmatpush.msra.mxu0 0.0
  %431 = vmatpush.msra.mxu0 0.0
  %432 = vmatpush.msra.mxu0 0.0
  %433 = vmatpush.msra.mxu0 0.0
  %434 = vmatpush.msra.mxu0 0.0
  %435 = vmatpush.msra.mxu0 0.0
  %436 = vmatpush.msra.mxu0 0.0
  %437 = vmatpush.msra.mxu0 0.0
  %438 = vmatpush.msra.mxu0 %v407
  %439 = vmatpush.msra.mxu0 %v406
  %440 = vmatmul.f32.gmra.mxu0 %v419
  %v441 = vpop.f32.mrf.mxu0
  %v442 = vadd.f32 %v412, %v441
  %443 = vmatmul.f32.gmra.mxu0 %v422
  %v444 = vpop.f32.mrf.mxu0
  %v445 = vadd.f32 %v416, %v444
  %446 = vdwg.mxu0
  %v447 = vmax.f32 %v442, 0.0
  %v448 = vmax.f32 %v445, 0.0
  %449 = vset.pattern.permute.xlu0 9
  %450 = vperm.xlu0 %449, %v78
  %v451 = vpop.permute.xlu0 %450
  %453 = vset.pattern.permute.xlu0 9
  %454 = vperm.xlu0 %453, %v79
  %v455 = vpop.permute.xlu0 %454
  %457 = vrot.lane.b32.xlu0 %v408, 112
  %v458 = vpop.permute.xlu0 %457
  %459 = vrot.lane.b32.xlu0 %v409, 112
  %v460 = vpop.permute.xlu0 %459
  %v461 = vsel %vm44, %v458, 0
  %v463 = vsel %vm44, %v460, 0
  %465 = vmatpush.msra.mxu0 0.0
  %466 = vmatpush.msra.mxu0 0.0
  %467 = vmatpush.msra.mxu0 0.0
  %468 = vmatpush.msra.mxu0 0.0
  %469 = vmatpush.msra.mxu0 0.0
  %470 = vmatpush.msra.mxu0 0.0
  %471 = vmatpush.msra.mxu0 0.0
  %472 = vmatpush.msra.mxu0 0.0
  %473 = vmatpush.msra.mxu0 0.0
  %474 = vmatpush.msra.mxu0 0.0
  %475 = vmatpush.msra.mxu0 0.0
  %476 = vmatpush.msra.mxu0 0.0
  %477 = vmatpush.msra.mxu0 0.0
  %478 = vmatpush.msra.mxu0 0.0
  %479 = vmatpush.msra.mxu0 %v448
  %480 = vmatpush.msra.mxu0 %v447
  %481 = vmatmul.f32.gmra.mxu0 %v461
  %v482 = vpop.f32.mrf.mxu0
  %v483 = vadd.f32 %v451, %v482
  %484 = vmatmul.f32.gmra.mxu0 %v463
  %v485 = vpop.f32.mrf.mxu0
  %v486 = vadd.f32 %v455, %v485
  %487 = vdwg.mxu0
  %v488 = vmax.f32 %v483, 0.0
  %v489 = vmax.f32 %v486, 0.0
  %490 = vset.pattern.permute.xlu0 10
  %491 = vperm.xlu0 %490, %v78
  %v492 = vpop.permute.xlu0 %491
  %494 = vset.pattern.permute.xlu0 10
  %495 = vperm.xlu0 %494, %v79
  %v496 = vpop.permute.xlu0 %495
  %498 = vrot.lane.b32.xlu0 %v408, 96
  %v499 = vpop.permute.xlu0 %498
  %500 = vrot.lane.b32.xlu0 %v409, 96
  %v501 = vpop.permute.xlu0 %500
  %v502 = vsel %vm44, %v499, 0
  %v504 = vsel %vm44, %v501, 0
  %506 = vmatpush.msra.mxu0 0.0
  %507 = vmatpush.msra.mxu0 0.0
  %508 = vmatpush.msra.mxu0 0.0
  %509 = vmatpush.msra.mxu0 0.0
  %510 = vmatpush.msra.mxu0 0.0
  %511 = vmatpush.msra.mxu0 0.0
  %512 = vmatpush.msra.mxu0 0.0
  %513 = vmatpush.msra.mxu0 0.0
  %514 = vmatpush.msra.mxu0 0.0
  %515 = vmatpush.msra.mxu0 0.0
  %516 = vmatpush.msra.mxu0 0.0
  %517 = vmatpush.msra.mxu0 0.0
  %518 = vmatpush.msra.mxu0 0.0
  %519 = vmatpush.msra.mxu0 0.0
  %520 = vmatpush.msra.mxu0 %v489
  %521 = vmatpush.msra.mxu0 %v488
  %522 = vmatmul.f32.gmra.mxu0 %v502
  %v523 = vpop.f32.mrf.mxu0
  %v524 = vadd.f32 %v492, %v523
  %525 = vmatmul.f32.gmra.mxu0 %v504
  %v526 = vpop.f32.mrf.mxu0
  %v527 = vadd.f32 %v496, %v526
  %528 = vdwg.mxu0
  %v529 = vmax.f32 %v524, 0.0
  %v530 = vmax.f32 %v527, 0.0
  %531 = vset.pattern.permute.xlu0 11
  %532 = vperm.xlu0 %531, %v78
  %v533 = vpop.permute.xlu0 %532
  %535 = vset.pattern.permute.xlu0 11
  %536 = vperm.xlu0 %535, %v79
  %v537 = vpop.permute.xlu0 %536
  %539 = vrot.lane.b32.xlu0 %v408, 80
  %v540 = vpop.permute.xlu0 %539
  %541 = vrot.lane.b32.xlu0 %v409, 80
  %v542 = vpop.permute.xlu0 %541
  %v543 = vsel %vm44, %v540, 0
  %v545 = vsel %vm44, %v542, 0
  %547 = vmatpush.msra.mxu0 0.0
  %548 = vmatpush.msra.mxu0 0.0
  %549 = vmatpush.msra.mxu0 0.0
  %550 = vmatpush.msra.mxu0 0.0
  %551 = vmatpush.msra.mxu0 0.0
  %552 = vmatpush.msra.mxu0 0.0
  %553 = vmatpush.msra.mxu0 0.0
  %554 = vmatpush.msra.mxu0 0.0
  %555 = vmatpush.msra.mxu0 0.0
  %556 = vmatpush.msra.mxu0 0.0
  %557 = vmatpush.msra.mxu0 0.0
  %558 = vmatpush.msra.mxu0 0.0
  %559 = vmatpush.msra.mxu0 0.0
  %560 = vmatpush.msra.mxu0 0.0
  %561 = vmatpush.msra.mxu0 %v530
  %562 = vmatpush.msra.mxu0 %v529
  %563 = vmatmul.f32.gmra.mxu0 %v543
  %v564 = vpop.f32.mrf.mxu0
  %v565 = vadd.f32 %v533, %v564
  %566 = vmatmul.f32.gmra.mxu0 %v545
  %v567 = vpop.f32.mrf.mxu0
  %v568 = vadd.f32 %v537, %v567
  %569 = vdwg.mxu0
  %v570 = vmax.f32 %v565, 0.0
  %v571 = vmax.f32 %v568, 0.0
  %572 = vset.pattern.permute.xlu0 12
  %573 = vperm.xlu0 %572, %v78
  %v574 = vpop.permute.xlu0 %573
  %576 = vset.pattern.permute.xlu0 12
  %577 = vperm.xlu0 %576, %v79
  %v578 = vpop.permute.xlu0 %577
  %580 = vrot.lane.b32.xlu0 %v408, 64
  %v581 = vpop.permute.xlu0 %580
  %582 = vrot.lane.b32.xlu0 %v409, 64
  %v583 = vpop.permute.xlu0 %582
  %v584 = vsel %vm44, %v581, 0
  %v586 = vsel %vm44, %v583, 0
  %588 = vmatpush.msra.mxu0 0.0
  %589 = vmatpush.msra.mxu0 0.0
  %590 = vmatpush.msra.mxu0 0.0
  %591 = vmatpush.msra.mxu0 0.0
  %592 = vmatpush.msra.mxu0 0.0
  %593 = vmatpush.msra.mxu0 0.0
  %594 = vmatpush.msra.mxu0 0.0
  %595 = vmatpush.msra.mxu0 0.0
  %596 = vmatpush.msra.mxu0 0.0
  %597 = vmatpush.msra.mxu0 0.0
  %598 = vmatpush.msra.mxu0 0.0
  %599 = vmatpush.msra.mxu0 0.0
  %600 = vmatpush.msra.mxu0 0.0
  %601 = vmatpush.msra.mxu0 0.0
  %602 = vmatpush.msra.mxu0 %v571
  %603 = vmatpush.msra.mxu0 %v570
  %604 = vmatmul.f32.gmra.mxu0 %v584
  %v605 = vpop.f32.mrf.mxu0
  %v606 = vadd.f32 %v574, %v605
  %607 = vmatmul.f32.gmra.mxu0 %v586
  %v608 = vpop.f32.mrf.mxu0
  %v609 = vadd.f32 %v578, %v608
  %610 = vdwg.mxu0
  %v611 = vmax.f32 %v606, 0.0
  %v612 = vmax.f32 %v609, 0.0
  %613 = vset.pattern.permute.xlu0 13
  %614 = vperm.xlu0 %613, %v78
  %v615 = vpop.permute.xlu0 %614
  %617 = vset.pattern.permute.xlu0 13
  %618 = vperm.xlu0 %617, %v79
  %v619 = vpop.permute.xlu0 %618
  %621 = vrot.lane.b32.xlu0 %v408, 48
  %v622 = vpop.permute.xlu0 %621
  %623 = vrot.lane.b32.xlu0 %v409, 48
  %v624 = vpop.permute.xlu0 %623
  %v625 = vsel %vm44, %v622, 0
  %v627 = vsel %vm44, %v624, 0
  %629 = vmatpush.msra.mxu0 0.0
  %630 = vmatpush.msra.mxu0 0.0
  %631 = vmatpush.msra.mxu0 0.0
  %632 = vmatpush.msra.mxu0 0.0
  %633 = vmatpush.msra.mxu0 0.0
  %634 = vmatpush.msra.mxu0 0.0
  %635 = vmatpush.msra.mxu0 0.0
  %636 = vmatpush.msra.mxu0 0.0
  %637 = vmatpush.msra.mxu0 0.0
  %638 = vmatpush.msra.mxu0 0.0
  %639 = vmatpush.msra.mxu0 0.0
  %640 = vmatpush.msra.mxu0 0.0
  %641 = vmatpush.msra.mxu0 0.0
  %642 = vmatpush.msra.mxu0 0.0
  %643 = vmatpush.msra.mxu0 %v612
  %644 = vmatpush.msra.mxu0 %v611
  %645 = vmatmul.f32.gmra.mxu0 %v625
  %v646 = vpop.f32.mrf.mxu0
  %v647 = vadd.f32 %v615, %v646
  %648 = vmatmul.f32.gmra.mxu0 %v627
  %v649 = vpop.f32.mrf.mxu0
  %v650 = vadd.f32 %v619, %v649
  %651 = vdwg.mxu0
  %v652 = vmax.f32 %v647, 0.0
  %v653 = vmax.f32 %v650, 0.0
  %654 = vset.pattern.permute.xlu0 14
  %655 = vperm.xlu0 %654, %v78
  %v656 = vpop.permute.xlu0 %655
  %658 = vset.pattern.permute.xlu0 14
  %659 = vperm.xlu0 %658, %v79
  %v660 = vpop.permute.xlu0 %659
  %662 = vrot.lane.b32.xlu0 %v408, 32
  %v663 = vpop.permute.xlu0 %662
  %664 = vrot.lane.b32.xlu0 %v409, 32
  %v665 = vpop.permute.xlu0 %664
  %v666 = vsel %vm44, %v663, 0
  %v668 = vsel %vm44, %v665, 0
  %670 = vmatpush.msra.mxu0 0.0
  %671 = vmatpush.msra.mxu0 0.0
  %672 = vmatpush.msra.mxu0 0.0
  %673 = vmatpush.msra.mxu0 0.0
  %674 = vmatpush.msra.mxu0 0.0
  %675 = vmatpush.msra.mxu0 0.0
  %676 = vmatpush.msra.mxu0 0.0
  %677 = vmatpush.msra.mxu0 0.0
  %678 = vmatpush.msra.mxu0 0.0
  %679 = vmatpush.msra.mxu0 0.0
  %680 = vmatpush.msra.mxu0 0.0
  %681 = vmatpush.msra.mxu0 0.0
  %682 = vmatpush.msra.mxu0 0.0
  %683 = vmatpush.msra.mxu0 0.0
  %684 = vmatpush.msra.mxu0 %v653
  %685 = vmatpush.msra.mxu0 %v652
  %686 = vmatmul.f32.gmra.mxu0 %v666
  %v687 = vpop.f32.mrf.mxu0
  %v688 = vadd.f32 %v656, %v687
  %689 = vmatmul.f32.gmra.mxu0 %v668
  %v690 = vpop.f32.mrf.mxu0
  %v691 = vadd.f32 %v660, %v690
  %692 = vdwg.mxu0
  %v693 = vmax.f32 %v688, 0.0
  %v694 = vmax.f32 %v691, 0.0
  %695 = vset.pattern.permute.xlu0 15
  %696 = vperm.xlu0 %695, %v78
  %v697 = vpop.permute.xlu0 %696
  %699 = vset.pattern.permute.xlu0 15
  %700 = vperm.xlu0 %699, %v79
  %v701 = vpop.permute.xlu0 %700
  %703 = vrot.lane.b32.xlu0 %v408, 16
  %v704 = vpop.permute.xlu0 %703
  %705 = vrot.lane.b32.xlu0 %v409, 16
  %v706 = vpop.permute.xlu0 %705
  %v707 = vsel %vm44, %v704, 0
  %v709 = vsel %vm44, %v706, 0
  %711 = vmatpush.msra.mxu0 0.0
  %712 = vmatpush.msra.mxu0 0.0
  %713 = vmatpush.msra.mxu0 0.0
  %714 = vmatpush.msra.mxu0 0.0
  %715 = vmatpush.msra.mxu0 0.0
  %716 = vmatpush.msra.mxu0 0.0
  %717 = vmatpush.msra.mxu0 0.0
  %718 = vmatpush.msra.mxu0 0.0
  %719 = vmatpush.msra.mxu0 0.0
  %720 = vmatpush.msra.mxu0 0.0
  %721 = vmatpush.msra.mxu0 0.0
  %722 = vmatpush.msra.mxu0 0.0
  %723 = vmatpush.msra.mxu0 0.0
  %724 = vmatpush.msra.mxu0 0.0
  %725 = vmatpush.msra.mxu0 %v694
  %726 = vmatpush.msra.mxu0 %v693
  %727 = vmatmul.f32.gmra.mxu0 %v707
  %v728 = vpop.f32.mrf.mxu0
  %v729 = vadd.f32 %v697, %v728
  %730 = vmatmul.f32.gmra.mxu0 %v709
  %v731 = vpop.f32.mrf.mxu0
  %v732 = vadd.f32 %v701, %v731
  %733 = vdwg.mxu0
  %v734 = vmax.f32 %v729, 0.0
  %v735 = vmax.f32 %v732, 0.0
  %v736 = vld [vmem:[%s3 + $0x10] sm:$0xff]
  %v737 = vld [vmem:[%s3 + $0x30] sm:$0xff]
  %738 = vset.pattern.permute.xlu0 16
  %739 = vperm.xlu0 %738, %v78
  %v740 = vpop.permute.xlu0 %739
  %742 = vset.pattern.permute.xlu0 16
  %743 = vperm.xlu0 %742, %v79
  %v744 = vpop.permute.xlu0 %743
  %v747 = vsel %vm44, %v736, 0
  %v750 = vsel %vm44, %v737, 0
  %752 = vmatpush.msra.mxu0 0.0
  %753 = vmatpush.msra.mxu0 0.0
  %754 = vmatpush.msra.mxu0 0.0
  %755 = vmatpush.msra.mxu0 0.0
  %756 = vmatpush.msra.mxu0 0.0
  %757 = vmatpush.msra.mxu0 0.0
  %758 = vmatpush.msra.mxu0 0.0
  %759 = vmatpush.msra.mxu0 0.0
  %760 = vmatpush.msra.mxu0 0.0
  %761 = vmatpush.msra.mxu0 0.0
  %762 = vmatpush.msra.mxu0 0.0
  %763 = vmatpush.msra.mxu0 0.0
  %764 = vmatpush.msra.mxu0 0.0
  %765 = vmatpush.msra.mxu0 0.0
  %766 = vmatpush.msra.mxu0 %v735
  %767 = vmatpush.msra.mxu0 %v734
  %768 = vmatmul.f32.gmra.mxu0 %v747
  %v769 = vpop.f32.mrf.mxu0
  %v770 = vadd.f32 %v740, %v769
  %771 = vmatmul.f32.gmra.mxu0 %v750
  %v772 = vpop.f32.mrf.mxu0
  %v773 = vadd.f32 %v744, %v772
  %774 = vdwg.mxu0
  %v775 = vmax.f32 %v770, 0.0
  %v776 = vmax.f32 %v773, 0.0
  %777 = vset.pattern.permute.xlu0 17
  %778 = vperm.xlu0 %777, %v78
  %v779 = vpop.permute.xlu0 %778
  %781 = vset.pattern.permute.xlu0 17
  %782 = vperm.xlu0 %781, %v79
  %v783 = vpop.permute.xlu0 %782
  %785 = vrot.lane.b32.xlu0 %v736, 112
  %v786 = vpop.permute.xlu0 %785
  %787 = vrot.lane.b32.xlu0 %v737, 112
  %v788 = vpop.permute.xlu0 %787
  %v789 = vsel %vm44, %v786, 0
  %v791 = vsel %vm44, %v788, 0
  %793 = vmatpush.msra.mxu0 0.0
  %794 = vmatpush.msra.mxu0 0.0
  %795 = vmatpush.msra.mxu0 0.0
  %796 = vmatpush.msra.mxu0 0.0
  %797 = vmatpush.msra.mxu0 0.0
  %798 = vmatpush.msra.mxu0 0.0
  %799 = vmatpush.msra.mxu0 0.0
  %800 = vmatpush.msra.mxu0 0.0
  %801 = vmatpush.msra.mxu0 0.0
  %802 = vmatpush.msra.mxu0 0.0
  %803 = vmatpush.msra.mxu0 0.0
  %804 = vmatpush.msra.mxu0 0.0
  %805 = vmatpush.msra.mxu0 0.0
  %806 = vmatpush.msra.mxu0 0.0
  %807 = vmatpush.msra.mxu0 %v776
  %808 = vmatpush.msra.mxu0 %v775
  %809 = vmatmul.f32.gmra.mxu0 %v789
  %v810 = vpop.f32.mrf.mxu0
  %v811 = vadd.f32 %v779, %v810
  %812 = vmatmul.f32.gmra.mxu0 %v791
  %v813 = vpop.f32.mrf.mxu0
  %v814 = vadd.f32 %v783, %v813
  %815 = vdwg.mxu0
  %v816 = vmax.f32 %v811, 0.0
  %v817 = vmax.f32 %v814, 0.0
  %818 = vset.pattern.permute.xlu0 18
  %819 = vperm.xlu0 %818, %v78
  %v820 = vpop.permute.xlu0 %819
  %822 = vset.pattern.permute.xlu0 18
  %823 = vperm.xlu0 %822, %v79
  %v824 = vpop.permute.xlu0 %823
  %826 = vrot.lane.b32.xlu0 %v736, 96
  %v827 = vpop.permute.xlu0 %826
  %828 = vrot.lane.b32.xlu0 %v737, 96
  %v829 = vpop.permute.xlu0 %828
  %v830 = vsel %vm44, %v827, 0
  %v832 = vsel %vm44, %v829, 0
  %834 = vmatpush.msra.mxu0 0.0
  %835 = vmatpush.msra.mxu0 0.0
  %836 = vmatpush.msra.mxu0 0.0
  %837 = vmatpush.msra.mxu0 0.0
  %838 = vmatpush.msra.mxu0 0.0
  %839 = vmatpush.msra.mxu0 0.0
  %840 = vmatpush.msra.mxu0 0.0
  %841 = vmatpush.msra.mxu0 0.0
  %842 = vmatpush.msra.mxu0 0.0
  %843 = vmatpush.msra.mxu0 0.0
  %844 = vmatpush.msra.mxu0 0.0
  %845 = vmatpush.msra.mxu0 0.0
  %846 = vmatpush.msra.mxu0 0.0
  %847 = vmatpush.msra.mxu0 0.0
  %848 = vmatpush.msra.mxu0 %v817
  %849 = vmatpush.msra.mxu0 %v816
  %850 = vmatmul.f32.gmra.mxu0 %v830
  %v851 = vpop.f32.mrf.mxu0
  %v852 = vadd.f32 %v820, %v851
  %853 = vmatmul.f32.gmra.mxu0 %v832
  %v854 = vpop.f32.mrf.mxu0
  %v855 = vadd.f32 %v824, %v854
  %856 = vdwg.mxu0
  %v857 = vmax.f32 %v852, 0.0
  %v858 = vmax.f32 %v855, 0.0
  %859 = vset.pattern.permute.xlu0 19
  %860 = vperm.xlu0 %859, %v78
  %v861 = vpop.permute.xlu0 %860
  %863 = vset.pattern.permute.xlu0 19
  %864 = vperm.xlu0 %863, %v79
  %v865 = vpop.permute.xlu0 %864
  %867 = vrot.lane.b32.xlu0 %v736, 80
  %v868 = vpop.permute.xlu0 %867
  %869 = vrot.lane.b32.xlu0 %v737, 80
  %v870 = vpop.permute.xlu0 %869
  %v871 = vsel %vm44, %v868, 0
  %v873 = vsel %vm44, %v870, 0
  %875 = vmatpush.msra.mxu0 0.0
  %876 = vmatpush.msra.mxu0 0.0
  %877 = vmatpush.msra.mxu0 0.0
  %878 = vmatpush.msra.mxu0 0.0
  %879 = vmatpush.msra.mxu0 0.0
  %880 = vmatpush.msra.mxu0 0.0
  %881 = vmatpush.msra.mxu0 0.0
  %882 = vmatpush.msra.mxu0 0.0
  %883 = vmatpush.msra.mxu0 0.0
  %884 = vmatpush.msra.mxu0 0.0
  %885 = vmatpush.msra.mxu0 0.0
  %886 = vmatpush.msra.mxu0 0.0
  %887 = vmatpush.msra.mxu0 0.0
  %888 = vmatpush.msra.mxu0 0.0
  %889 = vmatpush.msra.mxu0 %v858
  %890 = vmatpush.msra.mxu0 %v857
  %891 = vmatmul.f32.gmra.mxu0 %v871
  %v892 = vpop.f32.mrf.mxu0
  %v893 = vadd.f32 %v861, %v892
  %894 = vmatmul.f32.gmra.mxu0 %v873
  %v895 = vpop.f32.mrf.mxu0
  %v896 = vadd.f32 %v865, %v895
  %897 = vdwg.mxu0
  %v898 = vmax.f32 %v893, 0.0
  %v899 = vmax.f32 %v896, 0.0
  %900 = vset.pattern.permute.xlu0 20
  %901 = vperm.xlu0 %900, %v78
  %v902 = vpop.permute.xlu0 %901
  %904 = vset.pattern.permute.xlu0 20
  %905 = vperm.xlu0 %904, %v79
  %v906 = vpop.permute.xlu0 %905
  %908 = vrot.lane.b32.xlu0 %v736, 64
  %v909 = vpop.permute.xlu0 %908
  %910 = vrot.lane.b32.xlu0 %v737, 64
  %v911 = vpop.permute.xlu0 %910
  %v912 = vsel %vm44, %v909, 0
  %v914 = vsel %vm44, %v911, 0
  %916 = vmatpush.msra.mxu0 0.0
  %917 = vmatpush.msra.mxu0 0.0
  %918 = vmatpush.msra.mxu0 0.0
  %919 = vmatpush.msra.mxu0 0.0
  %920 = vmatpush.msra.mxu0 0.0
  %921 = vmatpush.msra.mxu0 0.0
  %922 = vmatpush.msra.mxu0 0.0
  %923 = vmatpush.msra.mxu0 0.0
  %924 = vmatpush.msra.mxu0 0.0
  %925 = vmatpush.msra.mxu0 0.0
  %926 = vmatpush.msra.mxu0 0.0
  %927 = vmatpush.msra.mxu0 0.0
  %928 = vmatpush.msra.mxu0 0.0
  %929 = vmatpush.msra.mxu0 0.0
  %930 = vmatpush.msra.mxu0 %v899
  %931 = vmatpush.msra.mxu0 %v898
  %932 = vmatmul.f32.gmra.mxu0 %v912
  %v933 = vpop.f32.mrf.mxu0
  %v934 = vadd.f32 %v902, %v933
  %935 = vmatmul.f32.gmra.mxu0 %v914
  %v936 = vpop.f32.mrf.mxu0
  %v937 = vadd.f32 %v906, %v936
  %938 = vdwg.mxu0
  %v939 = vmax.f32 %v934, 0.0
  %v940 = vmax.f32 %v937, 0.0
  %941 = vset.pattern.permute.xlu0 21
  %942 = vperm.xlu0 %941, %v78
  %v943 = vpop.permute.xlu0 %942
  %945 = vset.pattern.permute.xlu0 21
  %946 = vperm.xlu0 %945, %v79
  %v947 = vpop.permute.xlu0 %946
  %949 = vrot.lane.b32.xlu0 %v736, 48
  %v950 = vpop.permute.xlu0 %949
  %951 = vrot.lane.b32.xlu0 %v737, 48
  %v952 = vpop.permute.xlu0 %951
  %v953 = vsel %vm44, %v950, 0
  %v955 = vsel %vm44, %v952, 0
  %957 = vmatpush.msra.mxu0 0.0
  %958 = vmatpush.msra.mxu0 0.0
  %959 = vmatpush.msra.mxu0 0.0
  %960 = vmatpush.msra.mxu0 0.0
  %961 = vmatpush.msra.mxu0 0.0
  %962 = vmatpush.msra.mxu0 0.0
  %963 = vmatpush.msra.mxu0 0.0
  %964 = vmatpush.msra.mxu0 0.0
  %965 = vmatpush.msra.mxu0 0.0
  %966 = vmatpush.msra.mxu0 0.0
  %967 = vmatpush.msra.mxu0 0.0
  %968 = vmatpush.msra.mxu0 0.0
  %969 = vmatpush.msra.mxu0 0.0
  %970 = vmatpush.msra.mxu0 0.0
  %971 = vmatpush.msra.mxu0 %v940
  %972 = vmatpush.msra.mxu0 %v939
  %973 = vmatmul.f32.gmra.mxu0 %v953
  %v974 = vpop.f32.mrf.mxu0
  %v975 = vadd.f32 %v943, %v974
  %976 = vmatmul.f32.gmra.mxu0 %v955
  %v977 = vpop.f32.mrf.mxu0
  %v978 = vadd.f32 %v947, %v977
  %979 = vdwg.mxu0
  %v980 = vmax.f32 %v975, 0.0
  %v981 = vmax.f32 %v978, 0.0
  %982 = vset.pattern.permute.xlu0 22
  %983 = vperm.xlu0 %982, %v78
  %v984 = vpop.permute.xlu0 %983
  %986 = vset.pattern.permute.xlu0 22
  %987 = vperm.xlu0 %986, %v79
  %v988 = vpop.permute.xlu0 %987
  %990 = vrot.lane.b32.xlu0 %v736, 32
  %v991 = vpop.permute.xlu0 %990
  %992 = vrot.lane.b32.xlu0 %v737, 32
  %v993 = vpop.permute.xlu0 %992
  %v994 = vsel %vm44, %v991, 0
  %v996 = vsel %vm44, %v993, 0
  %998 = vmatpush.msra.mxu0 0.0
  %999 = vmatpush.msra.mxu0 0.0
  %1000 = vmatpush.msra.mxu0 0.0
  %1001 = vmatpush.msra.mxu0 0.0
  %1002 = vmatpush.msra.mxu0 0.0
  %1003 = vmatpush.msra.mxu0 0.0
  %1004 = vmatpush.msra.mxu0 0.0
  %1005 = vmatpush.msra.mxu0 0.0
  %1006 = vmatpush.msra.mxu0 0.0
  %1007 = vmatpush.msra.mxu0 0.0
  %1008 = vmatpush.msra.mxu0 0.0
  %1009 = vmatpush.msra.mxu0 0.0
  %1010 = vmatpush.msra.mxu0 0.0
  %1011 = vmatpush.msra.mxu0 0.0
  %1012 = vmatpush.msra.mxu0 %v981
  %1013 = vmatpush.msra.mxu0 %v980
  %1014 = vmatmul.f32.gmra.mxu0 %v994
  %v1015 = vpop.f32.mrf.mxu0
  %v1016 = vadd.f32 %v984, %v1015
  %1017 = vmatmul.f32.gmra.mxu0 %v996
  %v1018 = vpop.f32.mrf.mxu0
  %v1019 = vadd.f32 %v988, %v1018
  %1020 = vdwg.mxu0
  %v1021 = vmax.f32 %v1016, 0.0
  %v1022 = vmax.f32 %v1019, 0.0
  %1023 = vset.pattern.permute.xlu0 23
  %1024 = vperm.xlu0 %1023, %v78
  %v1025 = vpop.permute.xlu0 %1024
  %1027 = vset.pattern.permute.xlu0 23
  %1028 = vperm.xlu0 %1027, %v79
  %v1029 = vpop.permute.xlu0 %1028
  %1031 = vrot.lane.b32.xlu0 %v736, 16
  %v1032 = vpop.permute.xlu0 %1031
  %1033 = vrot.lane.b32.xlu0 %v737, 16
  %v1034 = vpop.permute.xlu0 %1033
  %v1035 = vsel %vm44, %v1032, 0
  %v1037 = vsel %vm44, %v1034, 0
  %1039 = vmatpush.msra.mxu0 0.0
  %1040 = vmatpush.msra.mxu0 0.0
  %1041 = vmatpush.msra.mxu0 0.0
  %1042 = vmatpush.msra.mxu0 0.0
  %1043 = vmatpush.msra.mxu0 0.0
  %1044 = vmatpush.msra.mxu0 0.0
  %1045 = vmatpush.msra.mxu0 0.0
  %1046 = vmatpush.msra.mxu0 0.0
  %1047 = vmatpush.msra.mxu0 0.0
  %1048 = vmatpush.msra.mxu0 0.0
  %1049 = vmatpush.msra.mxu0 0.0
  %1050 = vmatpush.msra.mxu0 0.0
  %1051 = vmatpush.msra.mxu0 0.0
  %1052 = vmatpush.msra.mxu0 0.0
  %1053 = vmatpush.msra.mxu0 %v1022
  %1054 = vmatpush.msra.mxu0 %v1021
  %1055 = vmatmul.f32.gmra.mxu0 %v1035
  %v1056 = vpop.f32.mrf.mxu0
  %v1057 = vadd.f32 %v1025, %v1056
  %1058 = vmatmul.f32.gmra.mxu0 %v1037
  %v1059 = vpop.f32.mrf.mxu0
  %v1060 = vadd.f32 %v1029, %v1059
  %1061 = vdwg.mxu0
  %v1062 = vmax.f32 %v1057, 0.0
  %v1063 = vmax.f32 %v1060, 0.0
  %v1064 = vld [vmem:[%s3 + $0x18] sm:$0xff]
  %v1065 = vld [vmem:[%s3 + $0x38] sm:$0xff]
  %1066 = vset.pattern.permute.xlu0 24
  %1067 = vperm.xlu0 %1066, %v78
  %v1068 = vpop.permute.xlu0 %1067
  %1070 = vset.pattern.permute.xlu0 24
  %1071 = vperm.xlu0 %1070, %v79
  %v1072 = vpop.permute.xlu0 %1071
  %v1075 = vsel %vm44, %v1064, 0
  %v1078 = vsel %vm44, %v1065, 0
  %1080 = vmatpush.msra.mxu0 0.0
  %1081 = vmatpush.msra.mxu0 0.0
  %1082 = vmatpush.msra.mxu0 0.0
  %1083 = vmatpush.msra.mxu0 0.0
  %1084 = vmatpush.msra.mxu0 0.0
  %1085 = vmatpush.msra.mxu0 0.0
  %1086 = vmatpush.msra.mxu0 0.0
  %1087 = vmatpush.msra.mxu0 0.0
  %1088 = vmatpush.msra.mxu0 0.0
  %1089 = vmatpush.msra.mxu0 0.0
  %1090 = vmatpush.msra.mxu0 0.0
  %1091 = vmatpush.msra.mxu0 0.0
  %1092 = vmatpush.msra.mxu0 0.0
  %1093 = vmatpush.msra.mxu0 0.0
  %1094 = vmatpush.msra.mxu0 %v1063
  %1095 = vmatpush.msra.mxu0 %v1062
  %1096 = vmatmul.f32.gmra.mxu0 %v1075
  %v1097 = vpop.f32.mrf.mxu0
  %v1098 = vadd.f32 %v1068, %v1097
  %1099 = vmatmul.f32.gmra.mxu0 %v1078
  %v1100 = vpop.f32.mrf.mxu0
  %v1101 = vadd.f32 %v1072, %v1100
  %1102 = vdwg.mxu0
  %v1103 = vmax.f32 %v1098, 0.0
  %v1104 = vmax.f32 %v1101, 0.0
  %1105 = vset.pattern.permute.xlu0 25
  %1106 = vperm.xlu0 %1105, %v78
  %v1107 = vpop.permute.xlu0 %1106
  %1109 = vset.pattern.permute.xlu0 25
  %1110 = vperm.xlu0 %1109, %v79
  %v1111 = vpop.permute.xlu0 %1110
  %1113 = vrot.lane.b32.xlu0 %v1064, 112
  %v1114 = vpop.permute.xlu0 %1113
  %1115 = vrot.lane.b32.xlu0 %v1065, 112
  %v1116 = vpop.permute.xlu0 %1115
  %v1117 = vsel %vm44, %v1114, 0
  %v1119 = vsel %vm44, %v1116, 0
  %1121 = vmatpush.msra.mxu0 0.0
  %1122 = vmatpush.msra.mxu0 0.0
  %1123 = vmatpush.msra.mxu0 0.0
  %1124 = vmatpush.msra.mxu0 0.0
  %1125 = vmatpush.msra.mxu0 0.0
  %1126 = vmatpush.msra.mxu0 0.0
  %1127 = vmatpush.msra.mxu0 0.0
  %1128 = vmatpush.msra.mxu0 0.0
  %1129 = vmatpush.msra.mxu0 0.0
  %1130 = vmatpush.msra.mxu0 0.0
  %1131 = vmatpush.msra.mxu0 0.0
  %1132 = vmatpush.msra.mxu0 0.0
  %1133 = vmatpush.msra.mxu0 0.0
  %1134 = vmatpush.msra.mxu0 0.0
  %1135 = vmatpush.msra.mxu0 %v1104
  %1136 = vmatpush.msra.mxu0 %v1103
  %1137 = vmatmul.f32.gmra.mxu0 %v1117
  %v1138 = vpop.f32.mrf.mxu0
  %v1139 = vadd.f32 %v1107, %v1138
  %1140 = vmatmul.f32.gmra.mxu0 %v1119
  %v1141 = vpop.f32.mrf.mxu0
  %v1142 = vadd.f32 %v1111, %v1141
  %1143 = vdwg.mxu0
  %v1144 = vmax.f32 %v1139, 0.0
  %v1145 = vmax.f32 %v1142, 0.0
  %1146 = vset.pattern.permute.xlu0 26
  %1147 = vperm.xlu0 %1146, %v78
  %v1148 = vpop.permute.xlu0 %1147
  %1150 = vset.pattern.permute.xlu0 26
  %1151 = vperm.xlu0 %1150, %v79
  %v1152 = vpop.permute.xlu0 %1151
  %1154 = vrot.lane.b32.xlu0 %v1064, 96
  %v1155 = vpop.permute.xlu0 %1154
  %1156 = vrot.lane.b32.xlu0 %v1065, 96
  %v1157 = vpop.permute.xlu0 %1156
  %v1158 = vsel %vm44, %v1155, 0
  %v1160 = vsel %vm44, %v1157, 0
  %1162 = vmatpush.msra.mxu0 0.0
  %1163 = vmatpush.msra.mxu0 0.0
  %1164 = vmatpush.msra.mxu0 0.0
  %1165 = vmatpush.msra.mxu0 0.0
  %1166 = vmatpush.msra.mxu0 0.0
  %1167 = vmatpush.msra.mxu0 0.0
  %1168 = vmatpush.msra.mxu0 0.0
  %1169 = vmatpush.msra.mxu0 0.0
  %1170 = vmatpush.msra.mxu0 0.0
  %1171 = vmatpush.msra.mxu0 0.0
  %1172 = vmatpush.msra.mxu0 0.0
  %1173 = vmatpush.msra.mxu0 0.0
  %1174 = vmatpush.msra.mxu0 0.0
  %1175 = vmatpush.msra.mxu0 0.0
  %1176 = vmatpush.msra.mxu0 %v1145
  %1177 = vmatpush.msra.mxu0 %v1144
  %1178 = vmatmul.f32.gmra.mxu0 %v1158
  %v1179 = vpop.f32.mrf.mxu0
  %v1180 = vadd.f32 %v1148, %v1179
  %1181 = vmatmul.f32.gmra.mxu0 %v1160
  %v1182 = vpop.f32.mrf.mxu0
  %v1183 = vadd.f32 %v1152, %v1182
  %1184 = vdwg.mxu0
  %v1185 = vmax.f32 %v1180, 0.0
  %v1186 = vmax.f32 %v1183, 0.0
  %1187 = vset.pattern.permute.xlu0 27
  %1188 = vperm.xlu0 %1187, %v78
  %v1189 = vpop.permute.xlu0 %1188
  %1191 = vset.pattern.permute.xlu0 27
  %1192 = vperm.xlu0 %1191, %v79
  %v1193 = vpop.permute.xlu0 %1192
  %1195 = vrot.lane.b32.xlu0 %v1064, 80
  %v1196 = vpop.permute.xlu0 %1195
  %1197 = vrot.lane.b32.xlu0 %v1065, 80
  %v1198 = vpop.permute.xlu0 %1197
  %v1199 = vsel %vm44, %v1196, 0
  %v1201 = vsel %vm44, %v1198, 0
  %1203 = vmatpush.msra.mxu0 0.0
  %1204 = vmatpush.msra.mxu0 0.0
  %1205 = vmatpush.msra.mxu0 0.0
  %1206 = vmatpush.msra.mxu0 0.0
  %1207 = vmatpush.msra.mxu0 0.0
  %1208 = vmatpush.msra.mxu0 0.0
  %1209 = vmatpush.msra.mxu0 0.0
  %1210 = vmatpush.msra.mxu0 0.0
  %1211 = vmatpush.msra.mxu0 0.0
  %1212 = vmatpush.msra.mxu0 0.0
  %1213 = vmatpush.msra.mxu0 0.0
  %1214 = vmatpush.msra.mxu0 0.0
  %1215 = vmatpush.msra.mxu0 0.0
  %1216 = vmatpush.msra.mxu0 0.0
  %1217 = vmatpush.msra.mxu0 %v1186
  %1218 = vmatpush.msra.mxu0 %v1185
  %1219 = vmatmul.f32.gmra.mxu0 %v1199
  %v1220 = vpop.f32.mrf.mxu0
  %v1221 = vadd.f32 %v1189, %v1220
  %1222 = vmatmul.f32.gmra.mxu0 %v1201
  %v1223 = vpop.f32.mrf.mxu0
  %v1224 = vadd.f32 %v1193, %v1223
  %1225 = vdwg.mxu0
  %v1226 = vmax.f32 %v1221, 0.0
  %v1227 = vmax.f32 %v1224, 0.0
  %1228 = vset.pattern.permute.xlu0 28
  %1229 = vperm.xlu0 %1228, %v78
  %v1230 = vpop.permute.xlu0 %1229
  %1232 = vset.pattern.permute.xlu0 28
  %1233 = vperm.xlu0 %1232, %v79
  %v1234 = vpop.permute.xlu0 %1233
  %1236 = vrot.lane.b32.xlu0 %v1064, 64
  %v1237 = vpop.permute.xlu0 %1236
  %1238 = vrot.lane.b32.xlu0 %v1065, 64
  %v1239 = vpop.permute.xlu0 %1238
  %v1240 = vsel %vm44, %v1237, 0
  %v1242 = vsel %vm44, %v1239, 0
  %1244 = vmatpush.msra.mxu0 0.0
  %1245 = vmatpush.msra.mxu0 0.0
  %1246 = vmatpush.msra.mxu0 0.0
  %1247 = vmatpush.msra.mxu0 0.0
  %1248 = vmatpush.msra.mxu0 0.0
  %1249 = vmatpush.msra.mxu0 0.0
  %1250 = vmatpush.msra.mxu0 0.0
  %1251 = vmatpush.msra.mxu0 0.0
  %1252 = vmatpush.msra.mxu0 0.0
  %1253 = vmatpush.msra.mxu0 0.0
  %1254 = vmatpush.msra.mxu0 0.0
  %1255 = vmatpush.msra.mxu0 0.0
  %1256 = vmatpush.msra.mxu0 0.0
  %1257 = vmatpush.msra.mxu0 0.0
  %1258 = vmatpush.msra.mxu0 %v1227
  %1259 = vmatpush.msra.mxu0 %v1226
  %1260 = vmatmul.f32.gmra.mxu0 %v1240
  %v1261 = vpop.f32.mrf.mxu0
  %v1262 = vadd.f32 %v1230, %v1261
  %1263 = vmatmul.f32.gmra.mxu0 %v1242
  %v1264 = vpop.f32.mrf.mxu0
  %v1265 = vadd.f32 %v1234, %v1264
  %1266 = vdwg.mxu0
  %v1267 = vmax.f32 %v1262, 0.0
  %v1268 = vmax.f32 %v1265, 0.0
  %1269 = vset.pattern.permute.xlu0 29
  %1270 = vperm.xlu0 %1269, %v78
  %v1271 = vpop.permute.xlu0 %1270
  %1273 = vset.pattern.permute.xlu0 29
  %1274 = vperm.xlu0 %1273, %v79
  %v1275 = vpop.permute.xlu0 %1274
  %1277 = vrot.lane.b32.xlu0 %v1064, 48
  %v1278 = vpop.permute.xlu0 %1277
  %1279 = vrot.lane.b32.xlu0 %v1065, 48
  %v1280 = vpop.permute.xlu0 %1279
  %v1281 = vsel %vm44, %v1278, 0
  %v1283 = vsel %vm44, %v1280, 0
  %1285 = vmatpush.msra.mxu0 0.0
  %1286 = vmatpush.msra.mxu0 0.0
  %1287 = vmatpush.msra.mxu0 0.0
  %1288 = vmatpush.msra.mxu0 0.0
  %1289 = vmatpush.msra.mxu0 0.0
  %1290 = vmatpush.msra.mxu0 0.0
  %1291 = vmatpush.msra.mxu0 0.0
  %1292 = vmatpush.msra.mxu0 0.0
  %1293 = vmatpush.msra.mxu0 0.0
  %1294 = vmatpush.msra.mxu0 0.0
  %1295 = vmatpush.msra.mxu0 0.0
  %1296 = vmatpush.msra.mxu0 0.0
  %1297 = vmatpush.msra.mxu0 0.0
  %1298 = vmatpush.msra.mxu0 0.0
  %1299 = vmatpush.msra.mxu0 %v1268
  %1300 = vmatpush.msra.mxu0 %v1267
  %1301 = vmatmul.f32.gmra.mxu0 %v1281
  %v1302 = vpop.f32.mrf.mxu0
  %v1303 = vadd.f32 %v1271, %v1302
  %1304 = vmatmul.f32.gmra.mxu0 %v1283
  %v1305 = vpop.f32.mrf.mxu0
  %v1306 = vadd.f32 %v1275, %v1305
  %1307 = vdwg.mxu0
  %v1308 = vmax.f32 %v1303, 0.0
  %v1309 = vmax.f32 %v1306, 0.0
  %v1310 = vld [vmem:[%s5] sm:$0x1]
  %v1311 = vld [vmem:[#allocation2] sm:$0x1]
  %1313 = vset.pattern.permute.xlu0 0
  %1314 = vperm.xlu0 %1313, %v1311
  %v1315 = vpop.permute.xlu0 %1314
  %v1317 = vperm.slane %v1315, 0
  %v1319 = vsel %vm44, %v1310, 0
  %1321 = vmatpush.msra.mxu0 0.0
  %1322 = vmatpush.msra.mxu0 0.0
  %1323 = vmatpush.msra.mxu0 0.0
  %1324 = vmatpush.msra.mxu0 0.0
  %1325 = vmatpush.msra.mxu0 0.0
  %1326 = vmatpush.msra.mxu0 0.0
  %1327 = vmatpush.msra.mxu0 0.0
  %1328 = vmatpush.msra.mxu0 0.0
  %1329 = vmatpush.msra.mxu0 0.0
  %1330 = vmatpush.msra.mxu0 0.0
  %1331 = vmatpush.msra.mxu0 0.0
  %1332 = vmatpush.msra.mxu0 0.0
  %1333 = vmatpush.msra.mxu0 0.0
  %1334 = vmatpush.msra.mxu0 0.0
  %1335 = vmatpush.msra.mxu0 %v1309
  %1336 = vmatpush.msra.mxu0 %v1308
  %1337 = vmatmul.f32.gmra.mxu0 %v1319
  %v1338 = vpop.f32.mrf.mxu0
  %v1339 = vadd.f32 %v1317, %v1338
  %1340 = vdwg.mxu0
  %1341 = vst [vmem:[%s7] sm:$0x1] %v1339
  // Predicated region
  $region30: #{mlp_forward.1} parent=0 // pred_check
    _
  $region31: #{mlp_forward.1} parent=0 // pred_check_branch
    %1343 = sbr.rel (0) target = $region33
  $region32: #{mlp_forward.1} parent=0 // pred_region
    _
  $region33: #{mlp_forward.1} parent=0 // pred_fallthru
    _
  // Predicated region
  $region34: #{mlp_forward.1} parent=0 // pred_check
    _
  $region35: #{mlp_forward.1} parent=0 // pred_check_branch
    %1345 = sbr.rel (0) target = $region37
  $region36: #{mlp_forward.1} parent=0 // pred_region
    _
  $region37: #{mlp_forward.1} parent=0 // pred_fallthru
    _

</llo_original>
